<compile_context>
chip_gen: v7x
topology: tpu7x:2x2x1
jax: 0.10.0
libtpu: 0.0.40
codegen_flags: <defaults>
</compile_context>

<pallas_src>
import math

import jax
import jax.numpy as jnp
from jax.experimental import pallas as pl
from jax.experimental.pallas import tpu as pltpu


# ----------------------------------------------------------------------------
# Beta-Bernstein polynomial coefficients (replicates calculate_theta2 without
# sympy/scipy): theta_i[m] = coefficient of x^m in
#   (x/2)^i (1 - x/2)^(d-i) / Beta(i+1, d+1-i)
# ----------------------------------------------------------------------------
def calculate_theta2(d):
    thetas = []
    for i in range(d + 1):
        beta = math.factorial(i) * math.factorial(d - i) / math.factorial(d + 1)
        coeffs = [0.0] * (d + 1)
        for j in range(d - i + 1):
            m = i + j
            coeffs[m] = math.comb(d - i, j) * (0.5 ** i) * ((-0.5) ** j) / beta
        thetas.append(coeffs)
    return thetas


def _round_up(v, m):
    return ((v + m - 1) // m) * m


# ----------------------------------------------------------------------------
# Per-generation VMEM clamp
# ----------------------------------------------------------------------------
_VMEM_CAP_CACHE = []


def _vmem_cap_bytes():
    if not _VMEM_CAP_CACHE:
        try:
            cap = int(pltpu.get_tpu_info().vmem_capacity_bytes)
        except Exception:
            cap = 64 << 20  # conservative: v7x per-TC VMEM (v5e/v6e have 128 MiB)
        _VMEM_CAP_CACHE.append(cap)
    return _VMEM_CAP_CACHE[0]


def _vmem_limit_bytes(n_pad, in_pad, h_pad, cls_pad, n_powers, prop_dtype):
    pb = jnp.finfo(prop_dtype).bits // 8
    # bf16 adjacency input + f32 widen headroom (degree reduce / f32 debug path)
    adj_bytes = n_pad * n_pad * (2 + 4)
    feat_bytes = n_pad * (4 * in_pad + 4 * cls_pad + h_pad * (6 * 4 + n_powers * pb))
    param_bytes = 4 * (in_pad * h_pad + (1 + n_powers) * h_pad * h_pad
                       + h_pad * cls_pad + 3 * h_pad + cls_pad)
    # Gridless call -> no pipeline double-buffering; no 2x multiplier.
    est = adj_bytes + feat_bytes + param_bytes + (4 << 20)
    cap = _vmem_cap_bytes() - (8 << 20)          # leave headroom below physical
    return int(max(min(est, cap), min(16 << 20, cap)))


# ----------------------------------------------------------------------------
# Kernel body
# ----------------------------------------------------------------------------
def make_bwgnn_kernel(n_powers, prop_dtype):
    """n_powers = d+1 Laplacian powers.

    prop_dtype: matmul operand dtype (f32 accumulation always).
      - jnp.bfloat16 (default): production path. A stays exactly {0,1}.
      - jnp.float32: DEBUG-ONLY exact path; f32 MXU matmuls run multi-pass at
        a fraction of bf16 rate on v5e/v6e/v7x. Do not use in production.
    """

    def kernel(x_ref, adj_ref,
               w1_ref, b1_ref, w2_ref, b2_ref,
               weff_ref, b3_ref, w4_ref, b4_ref,
               out_ref, p_slab):
        f32 = jnp.float32
        x = x_ref[...].astype(f32)

        # ---- shared 2-layer MLP (ReLU) ----
        h = jnp.dot(x, w1_ref[...], preferred_element_type=f32) + b1_ref[...]
        h = jnp.maximum(h, 0.0)
        h = jnp.dot(h, w2_ref[...], preferred_element_type=f32) + b2_ref[...]
        h = jnp.maximum(h, 0.0)

        # ---- D^-1/2 in sublane layout [N,1] (clamp deg >= 1, as reference) ----
        # Widen-to-f32 feeds straight into the row reduction; A itself is never
        # normalized or materialized in f32 on the fast path.
        deg = jnp.sum(adj_ref[...], axis=1, dtype=f32, keepdims=True)
        dinv = jax.lax.rsqrt(jnp.maximum(deg, 1.0))

        adj = adj_ref[...].astype(prop_dtype)    # bf16 path: no copy ({0,1} exact)
        hdim = h.shape[1]

        # ---- shared Laplacian powers, feature-scaling form ----
        #   p_0 = h ;  p_{k+1} = p_k - dinv * (A @ (p_k * dinv))
        # Each p_k is parked at lane offset k*H of the scratch slab so the
        # theta-folded projection becomes ONE wide-K matmul after the loop:
        #   acc = concat_k(p_k) @ concat_k(W_eff[k]) + b3
        p = h
        p_slab[:, 0:hdim] = p.astype(prop_dtype)
        for k in range(1, n_powers):
            q = (p * dinv).astype(prop_dtype)
            p = p - dinv * jnp.dot(adj, q, preferred_element_type=f32)
            p_slab[:, k * hdim:(k + 1) * hdim] = p.astype(prop_dtype)

        acc = jnp.dot(p_slab[...], weff_ref[...].astype(prop_dtype),
                      preferred_element_type=f32) + b3_ref[...]

        # ---- head: ReLU -> Linear4 ----
        h_emb = jnp.maximum(acc, 0.0)
        logits = jnp.dot(h_emb, w4_ref[...], preferred_element_type=f32) + b4_ref[...]
        out_ref[...] = logits.astype(out_ref.dtype)

    return kernel


# ----------------------------------------------------------------------------
# One-time parameter folding + lane-dense padding (hoisted out of the per-call
# path).  W_eff[k] = sum_i theta_i[k] * W3_i, stacked along K.
# ----------------------------------------------------------------------------
def fold_and_pad_params(params, thetas, in_feats, h_feats, num_classes):
    n_branches, n_powers = len(thetas), len(thetas[0])
    in_pad = _round_up(in_feats, 128)
    h_pad = _round_up(h_feats, 128)
    cls_pad = _round_up(num_classes, 128)

    theta_mat = jnp.asarray(thetas, jnp.float32)                  # [branches, powers]
    w3_blocks = params["w3"].reshape(n_branches, h_feats, h_feats)
    w_eff = jnp.einsum("ik,iab->kab", theta_mat, w3_blocks)       # [powers, h, h]
    w_eff = jnp.pad(w_eff, ((0, 0), (0, h_pad - h_feats), (0, h_pad - h_feats)))
    w_eff = w_eff.reshape(n_powers * h_pad, h_pad)                # K-stacked

    def pad2(a, r, c):
        return jnp.pad(a, ((0, r - a.shape[0]), (0, c - a.shape[1])))

    pp = {
        "w1": pad2(params["w1"], in_pad, h_pad), "b1": pad2(params["b1"], 1, h_pad),
        "w2": pad2(params["w2"], h_pad, h_pad),  "b2": pad2(params["b2"], 1, h_pad),
        "weff": w_eff,                           "b3": pad2(params["b3"], 1, h_pad),
        "w4": pad2(params["w4"], h_pad, cls_pad), "b4": pad2(params["b4"], 1, cls_pad),
    }
    return pp, n_powers


# ----------------------------------------------------------------------------
# Jitted forward: pad inputs, run the kernel, slice the padding off.
# ----------------------------------------------------------------------------
def make_bwgnn_forward(num_classes, n_powers, *, prop_dtype=jnp.bfloat16):
    kernel = make_bwgnn_kernel(n_powers, prop_dtype)

    @jax.jit
    def forward(x, adj, pp):
        n, in_feats = x.shape
        in_pad, h_pad = pp["w1"].shape
        cls_pad = pp["w4"].shape[1]
        # Lane-dense node axis: pad N to a multiple of 128 so adjacency vregs,
        # the A @ p contraction and the output stores are all unmasked.
        n_pad = _round_up(n, 128)

        x_p = jnp.pad(x.astype(jnp.float32),
                      ((0, n_pad - n), (0, in_pad - in_feats)))
        # {0,1} adjacency is exactly representable in bf16 -> lossless input,
        # half the DMA/VMEM for A.
        adj_p = jnp.pad(adj, ((0, n_pad - n), (0, n_pad - n))).astype(jnp.bfloat16)

        args = (x_p, adj_p, pp["w1"], pp["b1"], pp["w2"], pp["b2"],
                pp["weff"], pp["b3"], pp["w4"], pp["b4"])
        vmem = pl.BlockSpec(memory_space=pltpu.MemorySpace.VMEM)

        out_pad = pl.pallas_call(
            kernel,
            out_shape=jax.ShapeDtypeStruct((n_pad, cls_pad), jnp.float32),
            in_specs=[vmem] * len(args),
            out_specs=vmem,
            scratch_shapes=[pltpu.VMEM((n_pad, n_powers * h_pad), prop_dtype)],
            compiler_params=pltpu.CompilerParams(
                vmem_limit_bytes=_vmem_limit_bytes(
                    n_pad, in_pad, h_pad, cls_pad, n_powers, prop_dtype)),
        )(*args)

        # Padded zero rows of x produce h = relu(b1) != 0, but padded adjacency
        # columns are zero so they never mix into real rows; slice them off.
        return out_pad[:n, :num_classes]

    return forward


# ----------------------------------------------------------------------------
# Pure-JAX reference (original, un-restructured math: per-branch propagation,
# concat, W3) — validates the W_eff folding / shared-power restructuring.
# ----------------------------------------------------------------------------
def bwgnn_reference(x, adj, params, thetas):
    h = jax.nn.relu(x @ params["w1"] + params["b1"])
    h = jax.nn.relu(h @ params["w2"] + params["b2"])
    deg = jnp.sum(adj, axis=1, keepdims=True)
    dinv = 1.0 / jnp.sqrt(jnp.maximum(deg, 1.0))
    branches = []
    for theta in thetas:
        feat = h
        acc = theta[0] * feat
        for k in range(1, len(theta)):
            feat = feat - dinv * (adj @ (feat * dinv))
            acc = acc + theta[k] * feat
        branches.append(acc)
    hcat = jnp.concatenate(branches, axis=1)
    h3 = jax.nn.relu(hcat @ params["w3"] + params["b3"])
    return h3 @ params["w4"] + params["b4"]


# ----------------------------------------------------------------------------
# Deterministic init. Weights stored as [in, out].
# ----------------------------------------------------------------------------
def init_params(key, in_feats, h_feats, num_classes, n_branches):
    ks = jax.random.split(key, 8)

    def w(k, fan_in, fan_out):
        s = 1.0 / math.sqrt(fan_in)
        return jax.random.uniform(k, (fan_in, fan_out), jnp.float32, -s, s)

    def b(k, fan_in, fan_out):
        s = 1.0 / math.sqrt(fan_in)
        return jax.random.uniform(k, (1, fan_out), jnp.float32, -s, s)

    return {
        "w1": w(ks[0], in_feats, h_feats),             "b1": b(ks[1], in_feats, h_feats),
        "w2": w(ks[2], h_feats, h_feats),              "b2": b(ks[3], h_feats, h_feats),
        "w3": w(ks[4], h_feats * n_branches, h_feats), "b3": b(ks[5], h_feats * n_branches, h_feats),
        "w4": w(ks[6], h_feats, num_classes),          "b4": b(ks[7], h_feats, num_classes),
    }


if __name__ == "__main__":
    N = 16            # number of graph nodes
    IN_FEATS = 16
    H_FEATS = 32
    NUM_CLASSES = 4
    D = 2

    thetas = calculate_theta2(D)          # 3 branches x 3 coefficients

    key = jax.random.PRNGKey(0)
    k_x, k_adj, k_p = jax.random.split(key, 3)

    x = jax.random.normal(k_x, (N, IN_FEATS), jnp.float32)
    # deterministic random directed graph; A[v, u] = 1 iff edge u -> v
    adj = (jax.random.uniform(k_adj, (N, N)) < 0.3).astype(jnp.float32)

    params = init_params(k_p, IN_FEATS, H_FEATS, NUM_CLASSES, len(thetas))

    ref = bwgnn_reference(x, adj, params, thetas)

    # One-time parameter folding / padding (hoisted out of the per-call path).
    pp, n_powers = fold_and_pad_params(params, thetas, IN_FEATS, H_FEATS, NUM_CLASSES)

    # DEBUG-ONLY exact path (f32 operands): must match the reference tightly.
    fwd_exact = make_bwgnn_forward(NUM_CLASSES, n_powers, prop_dtype=jnp.float32)
    out_f32 = jax.block_until_ready(fwd_exact(x, adj, pp))
    assert out_f32.shape == (N, NUM_CLASSES)
    assert jnp.allclose(out_f32, ref, atol=3e-3, rtol=3e-3), \
        float(jnp.max(jnp.abs(out_f32 - ref)))

    # Production fast path: bf16 operands (A exact {0,1}, f32 dinv scaling,
    # f32 accumulation) — much tighter than the old bf16-normalized-A variant.
    fwd = make_bwgnn_forward(NUM_CLASSES, n_powers)
    out = jax.block_until_ready(fwd(x, adj, pp))
    assert out.shape == (N, NUM_CLASSES)
    assert jnp.allclose(out, ref, atol=0.1, rtol=0.1), \
        float(jnp.max(jnp.abs(out - ref)))

    print("KERNEL_OK")
</pallas_src>

<mosaic_0001>
module attributes {stable_mosaic.version = 11 : i64} {
  func.func @kernel(%arg0: memref<128x128xf32, #tpu.memory_space<vmem>>, %arg1: memref<128x128xbf16, #tpu.memory_space<vmem>>, %arg2: memref<128x128xf32, #tpu.memory_space<vmem>>, %arg3: memref<1x128xf32, #tpu.memory_space<vmem>>, %arg4: memref<128x128xf32, #tpu.memory_space<vmem>>, %arg5: memref<1x128xf32, #tpu.memory_space<vmem>>, %arg6: memref<384x128xf32, #tpu.memory_space<vmem>>, %arg7: memref<1x128xf32, #tpu.memory_space<vmem>>, %arg8: memref<128x128xf32, #tpu.memory_space<vmem>>, %arg9: memref<1x128xf32, #tpu.memory_space<vmem>>, %arg10: memref<128x128xf32, #tpu.memory_space<vmem>>, %arg11: memref<128x384xf32, #tpu.memory_space<vmem>>) attributes {dimension_semantics = [], scalar_prefetch = 0 : i64, scratch_operands = 1 : i64, tpu.core_type = #tpu.core_type<tc>} {
    %c0 = arith.constant 0 : index
    %c0_0 = arith.constant 0 : index
    %0 = vector.load %arg0[%c0, %c0_0] : memref<128x128xf32, #tpu.memory_space<vmem>>, vector<128x128xf32>
    %c0_1 = arith.constant 0 : index
    %c0_2 = arith.constant 0 : index
    %1 = vector.load %arg2[%c0_1, %c0_2] : memref<128x128xf32, #tpu.memory_space<vmem>>, vector<128x128xf32>
    %cst = arith.constant dense<0.000000e+00> : vector<128x128xf32>
    %2 = tpu.matmul %0, %1, %cst {dimension_numbers = #tpu.dot_dimension_numbers<[1], [0], [0], [1], [0, 0, 1, 1], [], []>} : vector<128x128xf32>, vector<128x128xf32>, vector<128x128xf32> -> vector<128x128xf32>
    %c0_3 = arith.constant 0 : index
    %c0_4 = arith.constant 0 : index
    %3 = vector.load %arg3[%c0_3, %c0_4] : memref<1x128xf32, #tpu.memory_space<vmem>>, vector<1x128xf32>
    %4 = vector.broadcast %3 : vector<1x128xf32> to vector<128x128xf32>
    %5 = arith.addf %2, %4 : vector<128x128xf32>
    %cst_5 = arith.constant 0.000000e+00 : f32
    %6 = vector.broadcast %cst_5 : f32 to vector<128x128xf32>
    %7 = arith.maximumf %5, %6 : vector<128x128xf32>
    %c0_6 = arith.constant 0 : index
    %c0_7 = arith.constant 0 : index
    %8 = vector.load %arg4[%c0_6, %c0_7] : memref<128x128xf32, #tpu.memory_space<vmem>>, vector<128x128xf32>
    %cst_8 = arith.constant dense<0.000000e+00> : vector<128x128xf32>
    %9 = tpu.matmul %7, %8, %cst_8 {dimension_numbers = #tpu.dot_dimension_numbers<[1], [0], [0], [1], [0, 0, 1, 1], [], []>} : vector<128x128xf32>, vector<128x128xf32>, vector<128x128xf32> -> vector<128x128xf32>
    %c0_9 = arith.constant 0 : index
    %c0_10 = arith.constant 0 : index
    %10 = vector.load %arg5[%c0_9, %c0_10] : memref<1x128xf32, #tpu.memory_space<vmem>>, vector<1x128xf32>
    %11 = vector.broadcast %10 : vector<1x128xf32> to vector<128x128xf32>
    %12 = arith.addf %9, %11 : vector<128x128xf32>
    %cst_11 = arith.constant 0.000000e+00 : f32
    %13 = vector.broadcast %cst_11 : f32 to vector<128x128xf32>
    %14 = arith.maximumf %12, %13 : vector<128x128xf32>
    %c0_12 = arith.constant 0 : index
    %c0_13 = arith.constant 0 : index
    %15 = vector.load %arg1[%c0_12, %c0_13] : memref<128x128xbf16, #tpu.memory_space<vmem>>, vector<128x128xbf16>
    %16 = arith.extf %15 : vector<128x128xbf16> to vector<128x128xf32>
    %cst_14 = arith.constant dense<0.000000e+00> : vector<128xf32>
    %17 = vector.multi_reduction <add>, %16, %cst_14 [1] : vector<128x128xf32> to vector<128xf32>
    %18 = vector.shape_cast %17 : vector<128xf32> to vector<128x1xf32>
    %cst_15 = arith.constant 1.000000e+00 : f32
    %19 = vector.broadcast %cst_15 : f32 to vector<128x1xf32>
    %20 = arith.maximumf %18, %19 : vector<128x1xf32>
    %21 = math.rsqrt %20 : vector<128x1xf32>
    %c0_16 = arith.constant 0 : index
    %c0_17 = arith.constant 0 : index
    %22 = vector.load %arg1[%c0_16, %c0_17] : memref<128x128xbf16, #tpu.memory_space<vmem>>, vector<128x128xbf16>
    %23 = arith.extf %22 : vector<128x128xbf16> to vector<128x128xf32>
    %c0_18 = arith.constant 0 : index
    %c0_19 = arith.constant 0 : index
    %24 = vector.load %arg11[%c0_18, %c0_19] : memref<128x384xf32, #tpu.memory_space<vmem>>, vector<128x128xf32>
    tpu.vector_store %arg11[%c0_18, %c0_19], %14 {strides = array<i32>} : memref<128x384xf32, #tpu.memory_space<vmem>>, vector<128x128xf32>,
    %25 = vector.broadcast %21 : vector<128x1xf32> to vector<128x128xf32>
    %26 = arith.mulf %14, %25 : vector<128x128xf32>
    %cst_20 = arith.constant dense<0.000000e+00> : vector<128x128xf32>
    %27 = tpu.matmul %23, %26, %cst_20 {dimension_numbers = #tpu.dot_dimension_numbers<[1], [0], [0], [1], [0, 0, 1, 1], [], []>} : vector<128x128xf32>, vector<128x128xf32>, vector<128x128xf32> -> vector<128x128xf32>
    %28 = vector.broadcast %21 : vector<128x1xf32> to vector<128x128xf32>
    %29 = arith.mulf %28, %27 : vector<128x128xf32>
    %30 = arith.subf %14, %29 : vector<128x128xf32>
    %c0_21 = arith.constant 0 : index
    %c128 = arith.constant 128 : index
    %31 = vector.load %arg11[%c0_21, %c128] : memref<128x384xf32, #tpu.memory_space<vmem>>, vector<128x128xf32>
    tpu.vector_store %arg11[%c0_21, %c128], %30 {strides = array<i32>} : memref<128x384xf32, #tpu.memory_space<vmem>>, vector<128x128xf32>,
    %32 = vector.broadcast %21 : vector<128x1xf32> to vector<128x128xf32>
    %33 = arith.mulf %30, %32 : vector<128x128xf32>
    %cst_22 = arith.constant dense<0.000000e+00> : vector<128x128xf32>
    %34 = tpu.matmul %23, %33, %cst_22 {dimension_numbers = #tpu.dot_dimension_numbers<[1], [0], [0], [1], [0, 0, 1, 1], [], []>} : vector<128x128xf32>, vector<128x128xf32>, vector<128x128xf32> -> vector<128x128xf32>
    %35 = vector.broadcast %21 : vector<128x1xf32> to vector<128x128xf32>
    %36 = arith.mulf %35, %34 : vector<128x128xf32>
    %37 = arith.subf %30, %36 : vector<128x128xf32>
    %c0_23 = arith.constant 0 : index
    %c256 = arith.constant 256 : index
    %38 = vector.load %arg11[%c0_23, %c256] : memref<128x384xf32, #tpu.memory_space<vmem>>, vector<128x128xf32>
    tpu.vector_store %arg11[%c0_23, %c256], %37 {strides = array<i32>} : memref<128x384xf32, #tpu.memory_space<vmem>>, vector<128x128xf32>,
    %c0_24 = arith.constant 0 : index
    %c0_25 = arith.constant 0 : index
    %39 = vector.load %arg11[%c0_24, %c0_25] : memref<128x384xf32, #tpu.memory_space<vmem>>, vector<128x384xf32>
    %c0_26 = arith.constant 0 : index
    %c0_27 = arith.constant 0 : index
    %40 = vector.load %arg6[%c0_26, %c0_27] : memref<384x128xf32, #tpu.memory_space<vmem>>, vector<384x128xf32>
    %cst_28 = arith.constant dense<0.000000e+00> : vector<128x128xf32>
    %41 = tpu.matmul %39, %40, %cst_28 {dimension_numbers = #tpu.dot_dimension_numbers<[1], [0], [0], [1], [0, 0, 1, 1], [], []>} : vector<128x384xf32>, vector<384x128xf32>, vector<128x128xf32> -> vector<128x128xf32>
    %c0_29 = arith.constant 0 : index
    %c0_30 = arith.constant 0 : index
    %42 = vector.load %arg7[%c0_29, %c0_30] : memref<1x128xf32, #tpu.memory_space<vmem>>, vector<1x128xf32>
    %43 = vector.broadcast %42 : vector<1x128xf32> to vector<128x128xf32>
    %44 = arith.addf %41, %43 : vector<128x128xf32>
    %cst_31 = arith.constant 0.000000e+00 : f32
    %45 = vector.broadcast %cst_31 : f32 to vector<128x128xf32>
    %46 = arith.maximumf %44, %45 : vector<128x128xf32>
    %c0_32 = arith.constant 0 : index
    %c0_33 = arith.constant 0 : index
    %47 = vector.load %arg8[%c0_32, %c0_33] : memref<128x128xf32, #tpu.memory_space<vmem>>, vector<128x128xf32>
    %cst_34 = arith.constant dense<0.000000e+00> : vector<128x128xf32>
    %48 = tpu.matmul %46, %47, %cst_34 {dimension_numbers = #tpu.dot_dimension_numbers<[1], [0], [0], [1], [0, 0, 1, 1], [], []>} : vector<128x128xf32>, vector<128x128xf32>, vector<128x128xf32> -> vector<128x128xf32>
    %c0_35 = arith.constant 0 : index
    %c0_36 = arith.constant 0 : index
    %49 = vector.load %arg9[%c0_35, %c0_36] : memref<1x128xf32, #tpu.memory_space<vmem>>, vector<1x128xf32>
    %50 = vector.broadcast %49 : vector<1x128xf32> to vector<128x128xf32>
    %51 = arith.addf %48, %50 : vector<128x128xf32>
    %c0_37 = arith.constant 0 : index
    %c0_38 = arith.constant 0 : index
    %52 = vector.load %arg10[%c0_37, %c0_38] : memref<128x128xf32, #tpu.memory_space<vmem>>, vector<128x128xf32>
    tpu.vector_store %arg10[%c0_37, %c0_38], %51 {strides = array<i32>} : memref<128x128xf32, #tpu.memory_space<vmem>>, vector<128x128xf32>,
    return
  }
}

</mosaic_0001>

<llo_original>
// kernel: forward.1
$region0: #{forward.1}
  #allocation0 [shape = 'u32[]', space=smem, size = 0x4, offset = 0x4, fixed_abs, tag = 'smem constant byte address 0x4 - core index']
  #allocation1 [shape = 'u32[144,128]{1,0:T(1,128)}', space=vmem, size = 0x12000, scoped, tag = 'internal scratch']
  #allocation2 [shape = 'f32[128,384]{1,0:T(8,128)}', space=vmem, size = 0x30000, scoped, tag = 'scratch operand']
  %s0 = inlined_call_operand.vmem [shape: f32[128,128], index: 0, kind: input, shape index: {}]
  %s1 = inlined_call_operand.vmem [shape: bf16[128,128], index: 1, kind: input, shape index: {}]
  %s2 = inlined_call_operand.vmem [shape: f32[128,128], index: 2, kind: input, shape index: {}]
  %s3 = inlined_call_operand.vmem [shape: f32[1,128], index: 3, kind: input, shape index: {}]
  %s4 = inlined_call_operand.vmem [shape: f32[128,128], index: 4, kind: input, shape index: {}]
  %s5 = inlined_call_operand.hbm [shape: f32[1,128], index: 5, kind: input, shape index: {}]
  %s6 = inlined_call_operand.hbm [shape: f32[384,128], index: 6, kind: input, shape index: {}]
  %s7 = inlined_call_operand.hbm [shape: f32[1,128], index: 7, kind: input, shape index: {}]
  %s8 = inlined_call_operand.hbm [shape: f32[128,128], index: 8, kind: input, shape index: {}]
  %s9 = inlined_call_operand.vmem [shape: f32[1,128], index: 9, kind: input, shape index: {}]
  %s10 = inlined_call_operand.vmem [shape: f32[128,128], index: 10, kind: output, shape index: {}]
  %s11 = sld [smem:[#allocation0]]
  $region66: #{forward.1} parent=0
    _
  %s13 = ssub.s32 1, %s11
  %s14 = scalar_select 0, %s13, %s11
  $region1: #{forward.1} parent=0
    #allocation3 [shape = 'u8[512]{0}', space=vmem, size = 0x400, scoped, tag = 'input window, operand 5, single buffered']
    #allocation4 [shape = 's32[1]{0}', space=sflag, size = 0x4, scoped, tag = 'scoped memory for forward.1']
    #allocation5 [shape = 'u8[196608]{0}', space=vmem, size = 0x30000, scoped, tag = 'input window, operand 6, single buffered']
    #allocation6 [shape = 's32[1]{0}', space=sflag, size = 0x4, scoped, tag = 'scoped memory for forward.1']
    #allocation7 [shape = 'u8[512]{0}', space=vmem, size = 0x400, scoped, tag = 'input window, operand 7, single buffered']
    #allocation8 [shape = 'u8[65536]{0}', space=vmem, size = 0x10000, scoped, tag = 'input window, operand 8, single buffered']
    #allocation9 [shape = 's32[1]{0}', space=sflag, size = 0x4, scoped, tag = 'scoped memory for forward.1']
    %15 = vsyncpa [#allocation4], 0
    %16 = vsyncpa [#allocation6], 0
    %17 = vsyncpa [#allocation9], 0
    // Predicated region
    $region2: #{forward.1} parent=1 // pred_check
      _
    $region3: #{forward.1} parent=1 // pred_check_branch
      %19 = sbr.rel (0) target = $region5
    $region4: #{forward.1} parent=1 // pred_region
      _
    $region5: #{forward.1} parent=1 // pred_fallthru
      _
    // Predicated region
    $region6: #{forward.1} parent=1 // pred_check
      _
    $region7: #{forward.1} parent=1 // pred_check_branch
      %21 = sbr.rel (0) target = $region9
    $region8: #{forward.1} parent=1 // pred_region
      _
    $region9: #{forward.1} parent=1 // pred_fallthru
      _
    // Predicated region
    $region10: #{forward.1} parent=1 // pred_check
      _
    $region11: #{forward.1} parent=1 // pred_check_branch
      %23 = sbr.rel (0) target = $region13
    $region12: #{forward.1} parent=1 // pred_region
      _
    $region13: #{forward.1} parent=1 // pred_fallthru
      _
    // Predicated region
    $region14: #{forward.1} parent=1 // pred_check
      _
    $region15: #{forward.1} parent=1 // pred_check_branch
      %25 = sbr.rel (0) target = $region17
    $region16: #{forward.1} parent=1 // pred_region
      _
    $region17: #{forward.1} parent=1 // pred_fallthru
      _
    // Predicated region
    $region18: #{forward.1} parent=1 // pred_check
      _
    $region19: #{forward.1} parent=1 // pred_check_branch
      %27 = sbr.rel (0) target = $region21
    $region20: #{forward.1} parent=1 // pred_region
      _
    $region21: #{forward.1} parent=1 // pred_fallthru
      _
    // Predicated region
    $region22: #{forward.1} parent=1 // pred_check
      _
    $region23: #{forward.1} parent=1 // pred_check_branch
      %29 = sbr.rel (0) target = $region25
    $region24: #{forward.1} parent=1 // pred_region
      %s31 = ssub.s32 16, 16
      %32 = vsyncadd [#allocation4], %s31
      %s34 = sshll.u32 [#allocation3], 4
      %s35 = int_to_ptr.vmem [resolvable:$true] %s34
      %37 = dma.hbm_to_vmem [thread:$0]  %s5, 16, %s35, [#allocation4]
    $region25: #{forward.1} parent=1 // pred_fallthru
      _
    // Predicated region
    $region26: #{forward.1} parent=1 // pred_check
      _
    $region27: #{forward.1} parent=1 // pred_check_branch
      %39 = sbr.rel (0) target = $region29
    $region28: #{forward.1} parent=1 // pred_region
      %s41 = ssub.s32 6144, 6144
      %42 = vsyncadd [#allocation6], %s41
      %s43 = sshll.u32 [#allocation5], 4
      %s44 = int_to_ptr.vmem [resolvable:$true] %s43
      %49 = dma.hbm_to_vmem [thread:$0]  %s6, 6144, %s44, [#allocation6], 128, 128, 8
    $region29: #{forward.1} parent=1 // pred_fallthru
      _
    // Predicated region
    $region30: #{forward.1} parent=1 // pred_check
      _
    $region31: #{forward.1} parent=1 // pred_check_branch
      %51 = sbr.rel (0) target = $region33
    $region32: #{forward.1} parent=1 // pred_region
      %s53 = ssub.s32 16, 16
      %54 = vsyncadd [#allocation6], %s53
      %s56 = sshll.u32 [#allocation7], 4
      %s57 = int_to_ptr.vmem [resolvable:$true] %s56
      %59 = dma.hbm_to_vmem [thread:$0]  %s7, 16, %s57, [#allocation6]
    $region33: #{forward.1} parent=1 // pred_fallthru
      _
    // Predicated region
    $region34: #{forward.1} parent=1 // pred_check
      _
    $region35: #{forward.1} parent=1 // pred_check_branch
      %61 = sbr.rel (0) target = $region37
    $region36: #{forward.1} parent=1 // pred_region
      %s63 = ssub.s32 2048, 2048
      %64 = vsyncadd [#allocation9], %s63
      %s65 = sshll.u32 [#allocation8], 4
      %s66 = int_to_ptr.vmem [resolvable:$true] %s65
      %71 = dma.hbm_to_vmem [thread:$0]  %s8, 2048, %s66, [#allocation9], 128, 128, 8
    $region37: #{forward.1} parent=1 // pred_fallthru
      _
    // Predicated region
    $region38: #{forward.1} parent=1 // pred_check
      _
    $region39: #{forward.1} parent=1 // pred_check_branch
      %73 = sbr.rel (0) target = $region41
    $region40: #{forward.1} parent=1 // pred_region
      _
    $region41: #{forward.1} parent=1 // pred_fallthru
      _
    // Predicated region
    $region42: #{forward.1} parent=1 // pred_check
      _
    $region43: #{forward.1} parent=1 // pred_check_branch
      %75 = sbr.rel (0) target = $region45
    $region44: #{forward.1} parent=1 // pred_region
      %76 = dma.done [#allocation4], 16
    $region45: #{forward.1} parent=1 // pred_fallthru
      _
    // Predicated region
    $region46: #{forward.1} parent=1 // pred_check
      _
    $region47: #{forward.1} parent=1 // pred_check_branch
      %78 = sbr.rel (0) target = $region49
    $region48: #{forward.1} parent=1 // pred_region
      %79 = dma.done [#allocation6], 6144
    $region49: #{forward.1} parent=1 // pred_fallthru
      _
    // Predicated region
    $region50: #{forward.1} parent=1 // pred_check
      _
    $region51: #{forward.1} parent=1 // pred_check_branch
      %81 = sbr.rel (0) target = $region53
    $region52: #{forward.1} parent=1 // pred_region
      %82 = dma.done [#allocation6], 16
    $region53: #{forward.1} parent=1 // pred_fallthru
      _
    // Predicated region
    $region54: #{forward.1} parent=1 // pred_check
      _
    $region55: #{forward.1} parent=1 // pred_check_branch
      %84 = sbr.rel (0) target = $region57
    $region56: #{forward.1} parent=1 // pred_region
      %85 = dma.done [#allocation9], 2048
    $region57: #{forward.1} parent=1 // pred_fallthru
      _
    %v86 = vld [vmem:[%s0] sm:$0xff]
    %v87 = vld [vmem:[%s0 + $0x8] sm:$0xff]
    %v88 = vld [vmem:[%s0 + $0x10] sm:$0xff]
    %v89 = vld [vmem:[%s0 + $0x18] sm:$0xff]
    %v90 = vld [vmem:[%s0 + $0x20] sm:$0xff]
    %v91 = vld [vmem:[%s0 + $0x28] sm:$0xff]
    %v92 = vld [vmem:[%s0 + $0x30] sm:$0xff]
    %v93 = vld [vmem:[%s0 + $0x38] sm:$0xff]
    %v94 = vld [vmem:[%s0 + $0x40] sm:$0xff]
    %v95 = vld [vmem:[%s0 + $0x48] sm:$0xff]
    %v96 = vld [vmem:[%s0 + $0x50] sm:$0xff]
    %v97 = vld [vmem:[%s0 + $0x58] sm:$0xff]
    %v98 = vld [vmem:[%s0 + $0x60] sm:$0xff]
    %v99 = vld [vmem:[%s0 + $0x68] sm:$0xff]
    %v100 = vld [vmem:[%s0 + $0x70] sm:$0xff]
    %v101 = vld [vmem:[%s0 + $0x78] sm:$0xff]
    %v102 = vld [vmem:[%s2] sm:$0xff]
    %v103 = vld [vmem:[%s2 + $0x8] sm:$0xff]
    %v104 = vld [vmem:[%s2 + $0x10] sm:$0xff]
    %v105 = vld [vmem:[%s2 + $0x18] sm:$0xff]
    %v106 = vld [vmem:[%s2 + $0x20] sm:$0xff]
    %v107 = vld [vmem:[%s2 + $0x28] sm:$0xff]
    %v108 = vld [vmem:[%s2 + $0x30] sm:$0xff]
    %v109 = vld [vmem:[%s2 + $0x38] sm:$0xff]
    %v110 = vld [vmem:[%s2 + $0x40] sm:$0xff]
    %v111 = vld [vmem:[%s2 + $0x48] sm:$0xff]
    %v112 = vld [vmem:[%s2 + $0x50] sm:$0xff]
    %v113 = vld [vmem:[%s2 + $0x58] sm:$0xff]
    %v114 = vld [vmem:[%s2 + $0x60] sm:$0xff]
    %v115 = vld [vmem:[%s2 + $0x68] sm:$0xff]
    %v116 = vld [vmem:[%s2 + $0x70] sm:$0xff]
    %v117 = vld [vmem:[%s2 + $0x78] sm:$0xff]
    %v118 = vld [vmem:[%s3] sm:$0x1]
    %v120 = vlaneseq
    %v121 = vshrl.u32 %v120, 7
    %v122 = vsub.s32 0, %v121
    %v123 = vrot.slane %v118, %v122
    %125 = vmatprep.subr.mxu0 0.0
    %126 = vmatpush1.msra.mxu0 %v102
    %127 = vmatprep.subr.mxu0 0.0
    %128 = vmatpush1.msra.mxu0 %v103
    %129 = vmatprep.subr.mxu0 0.0
    %130 = vmatpush1.msra.mxu0 %v104
    %131 = vmatprep.subr.mxu0 0.0
    %132 = vmatpush1.msra.mxu0 %v105
    %133 = vmatprep.subr.mxu0 0.0
    %134 = vmatpush1.msra.mxu0 %v106
    %135 = vmatprep.subr.mxu0 0.0
    %136 = vmatpush1.msra.mxu0 %v107
    %137 = vmatprep.subr.mxu0 0.0
    %138 = vmatpush1.msra.mxu0 %v108
    %139 = vmatprep.subr.mxu0 0.0
    %140 = vmatpush1.msra.mxu0 %v109
    %141 = vmatprep.subr.mxu0 0.0
    %142 = vmatpush1.msra.mxu0 %v110
    %143 = vmatprep.subr.mxu0 0.0
    %144 = vmatpush1.msra.mxu0 %v111
    %145 = vmatprep.subr.mxu0 0.0
    %146 = vmatpush1.msra.mxu0 %v112
    %147 = vmatprep.subr.mxu0 0.0
    %148 = vmatpush1.msra.mxu0 %v113
    %149 = vmatprep.subr.mxu0 0.0
    %150 = vmatpush1.msra.mxu0 %v114
    %151 = vmatprep.subr.mxu0 0.0
    %152 = vmatpush1.msra.mxu0 %v115
    %153 = vmatprep.subr.mxu0 0.0
    %154 = vmatpush1.msra.mxu0 %v116
    %155 = vmatprep.subr.mxu0 0.0
    %156 = vmatpush1.msra.mxu0 %v117
    %157 = vmatprep.subr.mxu0 0.0
    %158 = vmatpush1.msra.mxu0 0.0
    %159 = vmatprep.subr.mxu0 0.0
    %160 = vmatpush1.msra.mxu0 0.0
    %161 = vmatprep.subr.mxu0 0.0
    %162 = vmatpush1.msra.mxu0 0.0
    %163 = vmatprep.subr.mxu0 0.0
    %164 = vmatpush1.msra.mxu0 0.0
    %165 = vmatprep.subr.mxu0 0.0
    %166 = vmatpush1.msra.mxu0 0.0
    %167 = vmatprep.subr.mxu0 0.0
    %168 = vmatpush1.msra.mxu0 0.0
    %169 = vmatprep.subr.mxu0 0.0
    %170 = vmatpush1.msra.mxu0 0.0
    %171 = vmatprep.subr.mxu0 0.0
    %172 = vmatpush1.msra.mxu0 0.0
    %173 = vmatprep.subr.mxu0 0.0
    %174 = vmatpush1.msra.mxu0 0.0
    %175 = vmatprep.subr.mxu0 0.0
    %176 = vmatpush1.msra.mxu0 0.0
    %177 = vmatprep.subr.mxu0 0.0
    %178 = vmatpush1.msra.mxu0 0.0
    %179 = vmatprep.subr.mxu0 0.0
    %180 = vmatpush1.msra.mxu0 0.0
    %181 = vmatprep.subr.mxu0 0.0
    %182 = vmatpush1.msra.mxu0 0.0
    %183 = vmatprep.subr.mxu0 0.0
    %184 = vmatpush1.msra.mxu0 0.0
    %185 = vmatprep.subr.mxu0 0.0
    %186 = vmatpush1.msra.mxu0 0.0
    %187 = vmatprep.subr.mxu0 0.0
    %188 = vmatpush1.msra.mxu0 0.0
    %189 = vmatprep.mubr.f32.mxu0 0.0
    %190 = vmatmul.mubr.f32.gmra.mrb[0].mxu0 %v86
    %v191 = vpop.f32.mrb[0].mxu0
    %v192 = vadd.f32 %v123, %v191
    %v193 = vpop.f32.mrb[0].mxu0
    %194 = vmatprep.mubr.f32.mxu0 0.0
    %195 = vmatmul.mubr.f32.gmra.mrb[0].mxu0 %v87
    %v196 = vpop.f32.mrb[0].mxu0
    %v197 = vadd.f32 %v123, %v196
    %v198 = vpop.f32.mrb[0].mxu0
    %199 = vmatprep.mubr.f32.mxu0 0.0
    %200 = vmatmul.mubr.f32.gmra.mrb[0].mxu0 %v88
    %v201 = vpop.f32.mrb[0].mxu0
    %v202 = vadd.f32 %v123, %v201
    %v203 = vpop.f32.mrb[0].mxu0
    %204 = vmatprep.mubr.f32.mxu0 0.0
    %205 = vmatmul.mubr.f32.gmra.mrb[0].mxu0 %v89
    %v206 = vpop.f32.mrb[0].mxu0
    %v207 = vadd.f32 %v123, %v206
    %v208 = vpop.f32.mrb[0].mxu0
    %209 = vmatprep.mubr.f32.mxu0 0.0
    %210 = vmatmul.mubr.f32.gmra.mrb[0].mxu0 %v90
    %v211 = vpop.f32.mrb[0].mxu0
    %v212 = vadd.f32 %v123, %v211
    %v213 = vpop.f32.mrb[0].mxu0
    %214 = vmatprep.mubr.f32.mxu0 0.0
    %215 = vmatmul.mubr.f32.gmra.mrb[0].mxu0 %v91
    %v216 = vpop.f32.mrb[0].mxu0
    %v217 = vadd.f32 %v123, %v216
    %v218 = vpop.f32.mrb[0].mxu0
    %219 = vmatprep.mubr.f32.mxu0 0.0
    %220 = vmatmul.mubr.f32.gmra.mrb[0].mxu0 %v92
    %v221 = vpop.f32.mrb[0].mxu0
    %v222 = vadd.f32 %v123, %v221
    %v223 = vpop.f32.mrb[0].mxu0
    %224 = vmatprep.mubr.f32.mxu0 0.0
    %225 = vmatmul.mubr.f32.gmra.mrb[0].mxu0 %v93
    %v226 = vpop.f32.mrb[0].mxu0
    %v227 = vadd.f32 %v123, %v226
    %v228 = vpop.f32.mrb[0].mxu0
    %229 = vmatprep.mubr.f32.mxu0 0.0
    %230 = vmatmul.mubr.f32.gmra.mrb[0].mxu0 %v94
    %v231 = vpop.f32.mrb[0].mxu0
    %v232 = vadd.f32 %v123, %v231
    %v233 = vpop.f32.mrb[0].mxu0
    %234 = vmatprep.mubr.f32.mxu0 0.0
    %235 = vmatmul.mubr.f32.gmra.mrb[0].mxu0 %v95
    %v236 = vpop.f32.mrb[0].mxu0
    %v237 = vadd.f32 %v123, %v236
    %v238 = vpop.f32.mrb[0].mxu0
    %239 = vmatprep.mubr.f32.mxu0 0.0
    %240 = vmatmul.mubr.f32.gmra.mrb[0].mxu0 %v96
    %v241 = vpop.f32.mrb[0].mxu0
    %v242 = vadd.f32 %v123, %v241
    %v243 = vpop.f32.mrb[0].mxu0
    %244 = vmatprep.mubr.f32.mxu0 0.0
    %245 = vmatmul.mubr.f32.gmra.mrb[0].mxu0 %v97
    %v246 = vpop.f32.mrb[0].mxu0
    %v247 = vadd.f32 %v123, %v246
    %v248 = vpop.f32.mrb[0].mxu0
    %249 = vmatprep.mubr.f32.mxu0 0.0
    %250 = vmatmul.mubr.f32.gmra.mrb[0].mxu0 %v98
    %v251 = vpop.f32.mrb[0].mxu0
    %v252 = vadd.f32 %v123, %v251
    %v253 = vpop.f32.mrb[0].mxu0
    %254 = vmatprep.mubr.f32.mxu0 0.0
    %255 = vmatmul.mubr.f32.gmra.mrb[0].mxu0 %v99
    %v256 = vpop.f32.mrb[0].mxu0
    %v257 = vadd.f32 %v123, %v256
    %v258 = vpop.f32.mrb[0].mxu0
    %259 = vmatprep.mubr.f32.mxu0 0.0
    %260 = vmatmul.mubr.f32.gmra.mrb[0].mxu0 %v100
    %v261 = vpop.f32.mrb[0].mxu0
    %v262 = vadd.f32 %v123, %v261
    %v263 = vpop.f32.mrb[0].mxu0
    %264 = vmatprep.mubr.f32.mxu0 0.0
    %265 = vmatmul.mubr.f32.gmra.mrb[0].mxu0 %v101
    %v266 = vpop.f32.mrb[0].mxu0
    %v267 = vadd.f32 %v123, %v266
    %v268 = vpop.f32.mrb[0].mxu0
    %269 = vdwg.mxu0
    %v270 = vmax.f32 %v192, 0.0
    %v271 = vmax.f32 %v197, 0.0
    %v272 = vmax.f32 %v202, 0.0
    %v273 = vmax.f32 %v207, 0.0
    %v274 = vmax.f32 %v212, 0.0
    %v275 = vmax.f32 %v217, 0.0
    %v276 = vmax.f32 %v222, 0.0
    %v277 = vmax.f32 %v227, 0.0
    %v278 = vmax.f32 %v232, 0.0
    %v279 = vmax.f32 %v237, 0.0
    %v280 = vmax.f32 %v242, 0.0
    %v281 = vmax.f32 %v247, 0.0
    %v282 = vmax.f32 %v252, 0.0
    %v283 = vmax.f32 %v257, 0.0
    %v284 = vmax.f32 %v262, 0.0
    %v285 = vmax.f32 %v267, 0.0
    %v286 = vld [vmem:[%s4] sm:$0xff]
    %v287 = vld [vmem:[%s4 + $0x8] sm:$0xff]
    %v288 = vld [vmem:[%s4 + $0x10] sm:$0xff]
    %v289 = vld [vmem:[%s4 + $0x18] sm:$0xff]
    %v290 = vld [vmem:[%s4 + $0x20] sm:$0xff]
    %v291 = vld [vmem:[%s4 + $0x28] sm:$0xff]
    %v292 = vld [vmem:[%s4 + $0x30] sm:$0xff]
    %v293 = vld [vmem:[%s4 + $0x38] sm:$0xff]
    %v294 = vld [vmem:[%s4 + $0x40] sm:$0xff]
    %v295 = vld [vmem:[%s4 + $0x48] sm:$0xff]
    %v296 = vld [vmem:[%s4 + $0x50] sm:$0xff]
    %v297 = vld [vmem:[%s4 + $0x58] sm:$0xff]
    %v298 = vld [vmem:[%s4 + $0x60] sm:$0xff]
    %v299 = vld [vmem:[%s4 + $0x68] sm:$0xff]
    %v300 = vld [vmem:[%s4 + $0x70] sm:$0xff]
    %v301 = vld [vmem:[%s4 + $0x78] sm:$0xff]
    %v302 = vld [vmem:[#allocation3] sm:$0x1]
    %v304 = vlaneseq
    %v305 = vshrl.u32 %v304, 7
    %v306 = vsub.s32 0, %v305
    %v307 = vrot.slane %v302, %v306
    %309 = vmatprep.subr.mxu0 0.0
    %310 = vmatpush1.msra.mxu0 %v286
    %311 = vmatprep.subr.mxu0 0.0
    %312 = vmatpush1.msra.mxu0 %v287
    %313 = vmatprep.subr.mxu0 0.0
    %314 = vmatpush1.msra.mxu0 %v288
    %315 = vmatprep.subr.mxu0 0.0
    %316 = vmatpush1.msra.mxu0 %v289
    %317 = vmatprep.subr.mxu0 0.0
    %318 = vmatpush1.msra.mxu0 %v290
    %319 = vmatprep.subr.mxu0 0.0
    %320 = vmatpush1.msra.mxu0 %v291
    %321 = vmatprep.subr.mxu0 0.0
    %322 = vmatpush1.msra.mxu0 %v292
    %323 = vmatprep.subr.mxu0 0.0
    %324 = vmatpush1.msra.mxu0 %v293
    %325 = vmatprep.subr.mxu0 0.0
    %326 = vmatpush1.msra.mxu0 %v294
    %327 = vmatprep.subr.mxu0 0.0
    %328 = vmatpush1.msra.mxu0 %v295
    %329 = vmatprep.subr.mxu0 0.0
    %330 = vmatpush1.msra.mxu0 %v296
    %331 = vmatprep.subr.mxu0 0.0
    %332 = vmatpush1.msra.mxu0 %v297
    %333 = vmatprep.subr.mxu0 0.0
    %334 = vmatpush1.msra.mxu0 %v298
    %335 = vmatprep.subr.mxu0 0.0
    %336 = vmatpush1.msra.mxu0 %v299
    %337 = vmatprep.subr.mxu0 0.0
    %338 = vmatpush1.msra.mxu0 %v300
    %339 = vmatprep.subr.mxu0 0.0
    %340 = vmatpush1.msra.mxu0 %v301
    %341 = vmatprep.subr.mxu0 0.0
    %342 = vmatpush1.msra.mxu0 0.0
    %343 = vmatprep.subr.mxu0 0.0
    %344 = vmatpush1.msra.mxu0 0.0
    %345 = vmatprep.subr.mxu0 0.0
    %346 = vmatpush1.msra.mxu0 0.0
    %347 = vmatprep.subr.mxu0 0.0
    %348 = vmatpush1.msra.mxu0 0.0
    %349 = vmatprep.subr.mxu0 0.0
    %350 = vmatpush1.msra.mxu0 0.0
    %351 = vmatprep.subr.mxu0 0.0
    %352 = vmatpush1.msra.mxu0 0.0
    %353 = vmatprep.subr.mxu0 0.0
    %354 = vmatpush1.msra.mxu0 0.0
    %355 = vmatprep.subr.mxu0 0.0
    %356 = vmatpush1.msra.mxu0 0.0
    %357 = vmatprep.subr.mxu0 0.0
    %358 = vmatpush1.msra.mxu0 0.0
    %359 = vmatprep.subr.mxu0 0.0
    %360 = vmatpush1.msra.mxu0 0.0
    %361 = vmatprep.subr.mxu0 0.0
    %362 = vmatpush1.msra.mxu0 0.0
    %363 = vmatprep.subr.mxu0 0.0
    %364 = vmatpush1.msra.mxu0 0.0
    %365 = vmatprep.subr.mxu0 0.0
    %366 = vmatpush1.msra.mxu0 0.0
    %367 = vmatprep.subr.mxu0 0.0
    %368 = vmatpush1.msra.mxu0 0.0
    %369 = vmatprep.subr.mxu0 0.0
    %370 = vmatpush1.msra.mxu0 0.0
    %371 = vmatprep.subr.mxu0 0.0
    %372 = vmatpush1.msra.mxu0 0.0
    %373 = vmatprep.mubr.f32.mxu0 0.0
    %374 = vmatmul.mubr.f32.gmra.mrb[0].mxu0 %v270
    %v375 = vpop.f32.mrb[0].mxu0
    %v376 = vadd.f32 %v307, %v375
    %v377 = vpop.f32.mrb[0].mxu0
    %378 = vmatprep.mubr.f32.mxu0 0.0
    %379 = vmatmul.mubr.f32.gmra.mrb[0].mxu0 %v271
    %v380 = vpop.f32.mrb[0].mxu0
    %v381 = vadd.f32 %v307, %v380
    %v382 = vpop.f32.mrb[0].mxu0
    %383 = vmatprep.mubr.f32.mxu0 0.0
    %384 = vmatmul.mubr.f32.gmra.mrb[0].mxu0 %v272
    %v385 = vpop.f32.mrb[0].mxu0
    %v386 = vadd.f32 %v307, %v385
    %v387 = vpop.f32.mrb[0].mxu0
    %388 = vmatprep.mubr.f32.mxu0 0.0
    %389 = vmatmul.mubr.f32.gmra.mrb[0].mxu0 %v273
    %v390 = vpop.f32.mrb[0].mxu0
    %v391 = vadd.f32 %v307, %v390
    %v392 = vpop.f32.mrb[0].mxu0
    %393 = vmatprep.mubr.f32.mxu0 0.0
    %394 = vmatmul.mubr.f32.gmra.mrb[0].mxu0 %v274
    %v395 = vpop.f32.mrb[0].mxu0
    %v396 = vadd.f32 %v307, %v395
    %v397 = vpop.f32.mrb[0].mxu0
    %398 = vmatprep.mubr.f32.mxu0 0.0
    %399 = vmatmul.mubr.f32.gmra.mrb[0].mxu0 %v275
    %v400 = vpop.f32.mrb[0].mxu0
    %v401 = vadd.f32 %v307, %v400
    %v402 = vpop.f32.mrb[0].mxu0
    %403 = vmatprep.mubr.f32.mxu0 0.0
    %404 = vmatmul.mubr.f32.gmra.mrb[0].mxu0 %v276
    %v405 = vpop.f32.mrb[0].mxu0
    %v406 = vadd.f32 %v307, %v405
    %v407 = vpop.f32.mrb[0].mxu0
    %408 = vmatprep.mubr.f32.mxu0 0.0
    %409 = vmatmul.mubr.f32.gmra.mrb[0].mxu0 %v277
    %v410 = vpop.f32.mrb[0].mxu0
    %v411 = vadd.f32 %v307, %v410
    %v412 = vpop.f32.mrb[0].mxu0
    %413 = vmatprep.mubr.f32.mxu0 0.0
    %414 = vmatmul.mubr.f32.gmra.mrb[0].mxu0 %v278
    %v415 = vpop.f32.mrb[0].mxu0
    %v416 = vadd.f32 %v307, %v415
    %v417 = vpop.f32.mrb[0].mxu0
    %418 = vmatprep.mubr.f32.mxu0 0.0
    %419 = vmatmul.mubr.f32.gmra.mrb[0].mxu0 %v279
    %v420 = vpop.f32.mrb[0].mxu0
    %v421 = vadd.f32 %v307, %v420
    %v422 = vpop.f32.mrb[0].mxu0
    %423 = vmatprep.mubr.f32.mxu0 0.0
    %424 = vmatmul.mubr.f32.gmra.mrb[0].mxu0 %v280
    %v425 = vpop.f32.mrb[0].mxu0
    %v426 = vadd.f32 %v307, %v425
    %v427 = vpop.f32.mrb[0].mxu0
    %428 = vmatprep.mubr.f32.mxu0 0.0
    %429 = vmatmul.mubr.f32.gmra.mrb[0].mxu0 %v281
    %v430 = vpop.f32.mrb[0].mxu0
    %v431 = vadd.f32 %v307, %v430
    %v432 = vpop.f32.mrb[0].mxu0
    %433 = vmatprep.mubr.f32.mxu0 0.0
    %434 = vmatmul.mubr.f32.gmra.mrb[0].mxu0 %v282
    %v435 = vpop.f32.mrb[0].mxu0
    %v436 = vadd.f32 %v307, %v435
    %v437 = vpop.f32.mrb[0].mxu0
    %438 = vmatprep.mubr.f32.mxu0 0.0
    %439 = vmatmul.mubr.f32.gmra.mrb[0].mxu0 %v283
    %v440 = vpop.f32.mrb[0].mxu0
    %v441 = vadd.f32 %v307, %v440
    %v442 = vpop.f32.mrb[0].mxu0
    %443 = vmatprep.mubr.f32.mxu0 0.0
    %444 = vmatmul.mubr.f32.gmra.mrb[0].mxu0 %v284
    %v445 = vpop.f32.mrb[0].mxu0
    %v446 = vadd.f32 %v307, %v445
    %v447 = vpop.f32.mrb[0].mxu0
    %448 = vmatprep.mubr.f32.mxu0 0.0
    %449 = vmatmul.mubr.f32.gmra.mrb[0].mxu0 %v285
    %v450 = vpop.f32.mrb[0].mxu0
    %v451 = vadd.f32 %v307, %v450
    %v452 = vpop.f32.mrb[0].mxu0
    %453 = vdwg.mxu0
    %v454 = vmax.f32 %v376, 0.0
    %v455 = vmax.f32 %v381, 0.0
    %v456 = vmax.f32 %v386, 0.0
    %v457 = vmax.f32 %v391, 0.0
    %v458 = vmax.f32 %v396, 0.0
    %v459 = vmax.f32 %v401, 0.0
    %v460 = vmax.f32 %v406, 0.0
    %v461 = vmax.f32 %v411, 0.0
    %v462 = vmax.f32 %v416, 0.0
    %v463 = vmax.f32 %v421, 0.0
    %v464 = vmax.f32 %v426, 0.0
    %v465 = vmax.f32 %v431, 0.0
    %v466 = vmax.f32 %v436, 0.0
    %v467 = vmax.f32 %v441, 0.0
    %v468 = vmax.f32 %v446, 0.0
    %v469 = vmax.f32 %v451, 0.0
    %v470 = vld [vmem:[%s1] sm:$0xf]
    %v471 = vld [vmem:[%s1 + $0x4] sm:$0xf]
    %v472 = vld [vmem:[%s1 + $0x8] sm:$0xf]
    %v473 = vld [vmem:[%s1 + $0xc] sm:$0xf]
    %v474 = vld [vmem:[%s1 + $0x10] sm:$0xf]
    %v475 = vld [vmem:[%s1 + $0x14] sm:$0xf]
    %v476 = vld [vmem:[%s1 + $0x18] sm:$0xf]
    %v477 = vld [vmem:[%s1 + $0x1c] sm:$0xf]
    %v478 = vld [vmem:[%s1 + $0x20] sm:$0xf]
    %v479 = vld [vmem:[%s1 + $0x24] sm:$0xf]
    %v480 = vld [vmem:[%s1 + $0x28] sm:$0xf]
    %v481 = vld [vmem:[%s1 + $0x2c] sm:$0xf]
    %v482 = vld [vmem:[%s1 + $0x30] sm:$0xf]
    %v483 = vld [vmem:[%s1 + $0x34] sm:$0xf]
    %v484 = vld [vmem:[%s1 + $0x38] sm:$0xf]
    %v485 = vld [vmem:[%s1 + $0x3c] sm:$0xf]
    %v486 = vunpack.c.l.bf16 %v470
    %v487 = vunpack.c.l.bf16 %v471
    %v488 = vunpack.c.l.bf16 %v472
    %v489 = vunpack.c.l.bf16 %v473
    %v490 = vunpack.c.l.bf16 %v474
    %v491 = vunpack.c.l.bf16 %v475
    %v492 = vunpack.c.l.bf16 %v476
    %v493 = vunpack.c.l.bf16 %v477
    %v494 = vunpack.c.l.bf16 %v478
    %v495 = vunpack.c.l.bf16 %v479
    %v496 = vunpack.c.l.bf16 %v480
    %v497 = vunpack.c.l.bf16 %v481
    %v498 = vunpack.c.l.bf16 %v482
    %v499 = vunpack.c.l.bf16 %v483
    %v500 = vunpack.c.l.bf16 %v484
    %v501 = vunpack.c.l.bf16 %v485
    %502 = vadd.xlane.f32.xlu0 %v486
    %v503 = vpop.xlane.xlu0 %502
    %504 = vadd.xlane.f32.xlu0 %v487
    %v505 = vpop.xlane.xlu0 %504
    %506 = vadd.xlane.f32.xlu0 %v488
    %v507 = vpop.xlane.xlu0 %506
    %508 = vadd.xlane.f32.xlu0 %v489
    %v509 = vpop.xlane.xlu0 %508
    %510 = vadd.xlane.f32.xlu0 %v490
    %v511 = vpop.xlane.xlu0 %510
    %512 = vadd.xlane.f32.xlu0 %v491
    %v513 = vpop.xlane.xlu0 %512
    %514 = vadd.xlane.f32.xlu0 %v492
    %v515 = vpop.xlane.xlu0 %514
    %516 = vadd.xlane.f32.xlu0 %v493
    %v517 = vpop.xlane.xlu0 %516
    %518 = vadd.xlane.f32.xlu0 %v494
    %v519 = vpop.xlane.xlu0 %518
    %520 = vadd.xlane.f32.xlu0 %v495
    %v521 = vpop.xlane.xlu0 %520
    %522 = vadd.xlane.f32.xlu0 %v496
    %v523 = vpop.xlane.xlu0 %522
    %524 = vadd.xlane.f32.xlu0 %v497
    %v525 = vpop.xlane.xlu0 %524
    %526 = vadd.xlane.f32.xlu0 %v498
    %v527 = vpop.xlane.xlu0 %526
    %528 = vadd.xlane.f32.xlu0 %v499
    %v529 = vpop.xlane.xlu0 %528
    %530 = vadd.xlane.f32.xlu0 %v500
    %v531 = vpop.xlane.xlu0 %530
    %532 = vadd.xlane.f32.xlu0 %v501
    %v533 = vpop.xlane.xlu0 %532
    %v534 = vmax.f32 %v503, 1.0
    %v535 = vmax.f32 %v505, 1.0
    %v536 = vmax.f32 %v507, 1.0
    %v537 = vmax.f32 %v509, 1.0
    %v538 = vmax.f32 %v511, 1.0
    %v539 = vmax.f32 %v513, 1.0
    %v540 = vmax.f32 %v515, 1.0
    %v541 = vmax.f32 %v517, 1.0
    %v542 = vmax.f32 %v519, 1.0
    %v543 = vmax.f32 %v521, 1.0
    %v544 = vmax.f32 %v523, 1.0
    %v545 = vmax.f32 %v525, 1.0
    %v546 = vmax.f32 %v527, 1.0
    %v547 = vmax.f32 %v529, 1.0
    %v548 = vmax.f32 %v531, 1.0
    %v549 = vmax.f32 %v533, 1.0
    %v550 = vrsqrt.pop %v534
    %v551 = vrsqrt.pop %v535
    %v552 = vrsqrt.pop %v536
    %v553 = vrsqrt.pop %v537
    %v554 = vrsqrt.pop %v538
    %v555 = vrsqrt.pop %v539
    %v556 = vrsqrt.pop %v540
    %v557 = vrsqrt.pop %v541
    %v558 = vrsqrt.pop %v542
    %v559 = vrsqrt.pop %v543
    %v560 = vrsqrt.pop %v544
    %v561 = vrsqrt.pop %v545
    %v562 = vrsqrt.pop %v546
    %v563 = vrsqrt.pop %v547
    %v564 = vrsqrt.pop %v548
    %v565 = vrsqrt.pop %v549
    %566 = vst [vmem:[#allocation2] sm:$0xff] %v454
    %567 = vst [vmem:[#allocation2 + $0x18] sm:$0xff] %v455
    %568 = vst [vmem:[#allocation2 + $0x30] sm:$0xff] %v456
    %569 = vst [vmem:[#allocation2 + $0x48] sm:$0xff] %v457
    %570 = vst [vmem:[#allocation2 + $0x60] sm:$0xff] %v458
    %571 = vst [vmem:[#allocation2 + $0x78] sm:$0xff] %v459
    %572 = vst [vmem:[#allocation2 + $0x90] sm:$0xff] %v460
    %573 = vst [vmem:[#allocation2 + $0xa8] sm:$0xff] %v461
    %574 = vst [vmem:[#allocation2 + $0xc0] sm:$0xff] %v462
    %575 = vst [vmem:[#allocation2 + $0xd8] sm:$0xff] %v463
    %576 = vst [vmem:[#allocation2 + $0xf0] sm:$0xff] %v464
    %577 = vst [vmem:[#allocation2 + $0x108] sm:$0xff] %v465
    %578 = vst [vmem:[#allocation2 + $0x120] sm:$0xff] %v466
    %579 = vst [vmem:[#allocation2 + $0x138] sm:$0xff] %v467
    %580 = vst [vmem:[#allocation2 + $0x150] sm:$0xff] %v468
    %581 = vst [vmem:[#allocation2 + $0x168] sm:$0xff] %v469
    %v582 = vmul.f32 %v454, %v550
    %v583 = vmul.f32 %v455, %v551
    %v584 = vmul.f32 %v456, %v552
    %v585 = vmul.f32 %v457, %v553
    %v586 = vmul.f32 %v458, %v554
    %v587 = vmul.f32 %v459, %v555
    %v588 = vmul.f32 %v460, %v556
    %v589 = vmul.f32 %v461, %v557
    %v590 = vmul.f32 %v462, %v558
    %v591 = vmul.f32 %v463, %v559
    %v592 = vmul.f32 %v464, %v560
    %v593 = vmul.f32 %v465, %v561
    %v594 = vmul.f32 %v466, %v562
    %v595 = vmul.f32 %v467, %v563
    %v596 = vmul.f32 %v468, %v564
    %v597 = vmul.f32 %v469, %v565
    %598 = vmatprep.subr.mxu0 0.0
    %599 = vmatpush1.msra.mxu0 %v582
    %600 = vmatprep.subr.mxu0 0.0
    %601 = vmatpush1.msra.mxu0 %v583
    %602 = vmatprep.subr.mxu0 0.0
    %603 = vmatpush1.msra.mxu0 %v584
    %604 = vmatprep.subr.mxu0 0.0
    %605 = vmatpush1.msra.mxu0 %v585
    %606 = vmatprep.subr.mxu0 0.0
    %607 = vmatpush1.msra.mxu0 %v586
    %608 = vmatprep.subr.mxu0 0.0
    %609 = vmatpush1.msra.mxu0 %v587
    %610 = vmatprep.subr.mxu0 0.0
    %611 = vmatpush1.msra.mxu0 %v588
    %612 = vmatprep.subr.mxu0 0.0
    %613 = vmatpush1.msra.mxu0 %v589
    %614 = vmatprep.subr.mxu0 0.0
    %615 = vmatpush1.msra.mxu0 %v590
    %616 = vmatprep.subr.mxu0 0.0
    %617 = vmatpush1.msra.mxu0 %v591
    %618 = vmatprep.subr.mxu0 0.0
    %619 = vmatpush1.msra.mxu0 %v592
    %620 = vmatprep.subr.mxu0 0.0
    %621 = vmatpush1.msra.mxu0 %v593
    %622 = vmatprep.subr.mxu0 0.0
    %623 = vmatpush1.msra.mxu0 %v594
    %624 = vmatprep.subr.mxu0 0.0
    %625 = vmatpush1.msra.mxu0 %v595
    %626 = vmatprep.subr.mxu0 0.0
    %627 = vmatpush1.msra.mxu0 %v596
    %628 = vmatprep.subr.mxu0 0.0
    %629 = vmatpush1.msra.mxu0 %v597
    %630 = vmatprep.subr.mxu0 0.0
    %631 = vmatpush1.msra.mxu0 0.0
    %632 = vmatprep.subr.mxu0 0.0
    %633 = vmatpush1.msra.mxu0 0.0
    %634 = vmatprep.subr.mxu0 0.0
    %635 = vmatpush1.msra.mxu0 0.0
    %636 = vmatprep.subr.mxu0 0.0
    %637 = vmatpush1.msra.mxu0 0.0
    %638 = vmatprep.subr.mxu0 0.0
    %639 = vmatpush1.msra.mxu0 0.0
    %640 = vmatprep.subr.mxu0 0.0
    %641 = vmatpush1.msra.mxu0 0.0
    %642 = vmatprep.subr.mxu0 0.0
    %643 = vmatpush1.msra.mxu0 0.0
    %644 = vmatprep.subr.mxu0 0.0
    %645 = vmatpush1.msra.mxu0 0.0
    %646 = vmatprep.subr.mxu0 0.0
    %647 = vmatpush1.msra.mxu0 0.0
    %648 = vmatprep.subr.mxu0 0.0
    %649 = vmatpush1.msra.mxu0 0.0
    %650 = vmatprep.subr.mxu0 0.0
    %651 = vmatpush1.msra.mxu0 0.0
    %652 = vmatprep.subr.mxu0 0.0
    %653 = vmatpush1.msra.mxu0 0.0
    %654 = vmatprep.subr.mxu0 0.0
    %655 = vmatpush1.msra.mxu0 0.0
    %656 = vmatprep.subr.mxu0 0.0
    %657 = vmatpush1.msra.mxu0 0.0
    %658 = vmatprep.subr.mxu0 0.0
    %659 = vmatpush1.msra.mxu0 0.0
    %660 = vmatprep.subr.mxu0 0.0
    %661 = vmatpush1.msra.mxu0 0.0
    %662 = vmatprep.mubr.f32.mxu0 0.0
    %663 = vmatmul.mubr.f32.gmra.mrb[0].mxu0 %v486
    %v664 = vpop.f32.mrb[0].mxu0
    %v665 = vadd.f32 0.0, %v664
    %v666 = vpop.f32.mrb[0].mxu0
    %667 = vmatprep.mubr.f32.mxu0 0.0
    %668 = vmatmul.mubr.f32.gmra.mrb[0].mxu0 %v487
    %v669 = vpop.f32.mrb[0].mxu0
    %v670 = vadd.f32 0.0, %v669
    %v671 = vpop.f32.mrb[0].mxu0
    %672 = vmatprep.mubr.f32.mxu0 0.0
    %673 = vmatmul.mubr.f32.gmra.mrb[0].mxu0 %v488
    %v674 = vpop.f32.mrb[0].mxu0
    %v675 = vadd.f32 0.0, %v674
    %v676 = vpop.f32.mrb[0].mxu0
    %677 = vmatprep.mubr.f32.mxu0 0.0
    %678 = vmatmul.mubr.f32.gmra.mrb[0].mxu0 %v489
    %v679 = vpop.f32.mrb[0].mxu0
    %v680 = vadd.f32 0.0, %v679
    %v681 = vpop.f32.mrb[0].mxu0
    %682 = vmatprep.mubr.f32.mxu0 0.0
    %683 = vmatmul.mubr.f32.gmra.mrb[0].mxu0 %v490
    %v684 = vpop.f32.mrb[0].mxu0
    %v685 = vadd.f32 0.0, %v684
    %v686 = vpop.f32.mrb[0].mxu0
    %687 = vmatprep.mubr.f32.mxu0 0.0
    %688 = vmatmul.mubr.f32.gmra.mrb[0].mxu0 %v491
    %v689 = vpop.f32.mrb[0].mxu0
    %v690 = vadd.f32 0.0, %v689
    %v691 = vpop.f32.mrb[0].mxu0
    %692 = vmatprep.mubr.f32.mxu0 0.0
    %693 = vmatmul.mubr.f32.gmra.mrb[0].mxu0 %v492
    %v694 = vpop.f32.mrb[0].mxu0
    %v695 = vadd.f32 0.0, %v694
    %v696 = vpop.f32.mrb[0].mxu0
    %697 = vmatprep.mubr.f32.mxu0 0.0
    %698 = vmatmul.mubr.f32.gmra.mrb[0].mxu0 %v493
    %v699 = vpop.f32.mrb[0].mxu0
    %v700 = vadd.f32 0.0, %v699
    %v701 = vpop.f32.mrb[0].mxu0
    %702 = vmatprep.mubr.f32.mxu0 0.0
    %703 = vmatmul.mubr.f32.gmra.mrb[0].mxu0 %v494
    %v704 = vpop.f32.mrb[0].mxu0
    %v705 = vadd.f32 0.0, %v704
    %v706 = vpop.f32.mrb[0].mxu0
    %707 = vmatprep.mubr.f32.mxu0 0.0
    %708 = vmatmul.mubr.f32.gmra.mrb[0].mxu0 %v495
    %v709 = vpop.f32.mrb[0].mxu0
    %v710 = vadd.f32 0.0, %v709
    %v711 = vpop.f32.mrb[0].mxu0
    %712 = vmatprep.mubr.f32.mxu0 0.0
    %713 = vmatmul.mubr.f32.gmra.mrb[0].mxu0 %v496
    %v714 = vpop.f32.mrb[0].mxu0
    %v715 = vadd.f32 0.0, %v714
    %v716 = vpop.f32.mrb[0].mxu0
    %717 = vmatprep.mubr.f32.mxu0 0.0
    %718 = vmatmul.mubr.f32.gmra.mrb[0].mxu0 %v497
    %v719 = vpop.f32.mrb[0].mxu0
    %v720 = vadd.f32 0.0, %v719
    %v721 = vpop.f32.mrb[0].mxu0
    %722 = vmatprep.mubr.f32.mxu0 0.0
    %723 = vmatmul.mubr.f32.gmra.mrb[0].mxu0 %v498
    %v724 = vpop.f32.mrb[0].mxu0
    %v725 = vadd.f32 0.0, %v724
    %v726 = vpop.f32.mrb[0].mxu0
    %727 = vmatprep.mubr.f32.mxu0 0.0
    %728 = vmatmul.mubr.f32.gmra.mrb[0].mxu0 %v499
    %v729 = vpop.f32.mrb[0].mxu0
    %v730 = vadd.f32 0.0, %v729
    %v731 = vpop.f32.mrb[0].mxu0
    %732 = vmatprep.mubr.f32.mxu0 0.0
    %733 = vmatmul.mubr.f32.gmra.mrb[0].mxu0 %v500
    %v734 = vpop.f32.mrb[0].mxu0
    %v735 = vadd.f32 0.0, %v734
    %v736 = vpop.f32.mrb[0].mxu0
    %737 = vmatprep.mubr.f32.mxu0 0.0
    %738 = vmatmul.mubr.f32.gmra.mrb[0].mxu0 %v501
    %v739 = vpop.f32.mrb[0].mxu0
    %v740 = vadd.f32 0.0, %v739
    %v741 = vpop.f32.mrb[0].mxu0
    %742 = vdwg.mxu0
    %v743 = vmul.f32 %v550, %v665
    %v744 = vmul.f32 %v551, %v670
    %v745 = vmul.f32 %v552, %v675
    %v746 = vmul.f32 %v553, %v680
    %v747 = vmul.f32 %v554, %v685
    %v748 = vmul.f32 %v555, %v690
    %v749 = vmul.f32 %v556, %v695
    %v750 = vmul.f32 %v557, %v700
    %v751 = vmul.f32 %v558, %v705
    %v752 = vmul.f32 %v559, %v710
    %v753 = vmul.f32 %v560, %v715
    %v754 = vmul.f32 %v561, %v720
    %v755 = vmul.f32 %v562, %v725
    %v756 = vmul.f32 %v563, %v730
    %v757 = vmul.f32 %v564, %v735
    %v758 = vmul.f32 %v565, %v740
    %v759 = vsub.f32 %v454, %v743
    %v760 = vsub.f32 %v455, %v744
    %v761 = vsub.f32 %v456, %v745
    %v762 = vsub.f32 %v457, %v746
    %v763 = vsub.f32 %v458, %v747
    %v764 = vsub.f32 %v459, %v748
    %v765 = vsub.f32 %v460, %v749
    %v766 = vsub.f32 %v461, %v750
    %v767 = vsub.f32 %v462, %v751
    %v768 = vsub.f32 %v463, %v752
    %v769 = vsub.f32 %v464, %v753
    %v770 = vsub.f32 %v465, %v754
    %v771 = vsub.f32 %v466, %v755
    %v772 = vsub.f32 %v467, %v756
    %v773 = vsub.f32 %v468, %v757
    %v774 = vsub.f32 %v469, %v758
    %775 = vst [vmem:[#allocation2 + $0x8] sm:$0xff] %v759
    %776 = vst [vmem:[#allocation2 + $0x20] sm:$0xff] %v760
    %777 = vst [vmem:[#allocation2 + $0x38] sm:$0xff] %v761
    %778 = vst [vmem:[#allocation2 + $0x50] sm:$0xff] %v762
    %779 = vst [vmem:[#allocation2 + $0x68] sm:$0xff] %v763
    %780 = vst [vmem:[#allocation2 + $0x80] sm:$0xff] %v764
    %781 = vst [vmem:[#allocation2 + $0x98] sm:$0xff] %v765
    %782 = vst [vmem:[#allocation2 + $0xb0] sm:$0xff] %v766
    %783 = vst [vmem:[#allocation2 + $0xc8] sm:$0xff] %v767
    %784 = vst [vmem:[#allocation2 + $0xe0] sm:$0xff] %v768
    %785 = vst [vmem:[#allocation2 + $0xf8] sm:$0xff] %v769
    %786 = vst [vmem:[#allocation2 + $0x110] sm:$0xff] %v770
    %787 = vst [vmem:[#allocation2 + $0x128] sm:$0xff] %v771
    %788 = vst [vmem:[#allocation2 + $0x140] sm:$0xff] %v772
    %789 = vst [vmem:[#allocation2 + $0x158] sm:$0xff] %v773
    %790 = vst [vmem:[#allocation2 + $0x170] sm:$0xff] %v774
    %v791 = vmul.f32 %v759, %v550
    %v792 = vmul.f32 %v760, %v551
    %v793 = vmul.f32 %v761, %v552
    %v794 = vmul.f32 %v762, %v553
    %v795 = vmul.f32 %v763, %v554
    %v796 = vmul.f32 %v764, %v555
    %v797 = vmul.f32 %v765, %v556
    %v798 = vmul.f32 %v766, %v557
    %v799 = vmul.f32 %v767, %v558
    %v800 = vmul.f32 %v768, %v559
    %v801 = vmul.f32 %v769, %v560
    %v802 = vmul.f32 %v770, %v561
    %v803 = vmul.f32 %v771, %v562
    %v804 = vmul.f32 %v772, %v563
    %v805 = vmul.f32 %v773, %v564
    %v806 = vmul.f32 %v774, %v565
    %807 = vmatprep.subr.mxu0 0.0
    %808 = vmatpush1.msra.mxu0 %v791
    %809 = vmatprep.subr.mxu0 0.0
    %810 = vmatpush1.msra.mxu0 %v792
    %811 = vmatprep.subr.mxu0 0.0
    %812 = vmatpush1.msra.mxu0 %v793
    %813 = vmatprep.subr.mxu0 0.0
    %814 = vmatpush1.msra.mxu0 %v794
    %815 = vmatprep.subr.mxu0 0.0
    %816 = vmatpush1.msra.mxu0 %v795
    %817 = vmatprep.subr.mxu0 0.0
    %818 = vmatpush1.msra.mxu0 %v796
    %819 = vmatprep.subr.mxu0 0.0
    %820 = vmatpush1.msra.mxu0 %v797
    %821 = vmatprep.subr.mxu0 0.0
    %822 = vmatpush1.msra.mxu0 %v798
    %823 = vmatprep.subr.mxu0 0.0
    %824 = vmatpush1.msra.mxu0 %v799
    %825 = vmatprep.subr.mxu0 0.0
    %826 = vmatpush1.msra.mxu0 %v800
    %827 = vmatprep.subr.mxu0 0.0
    %828 = vmatpush1.msra.mxu0 %v801
    %829 = vmatprep.subr.mxu0 0.0
    %830 = vmatpush1.msra.mxu0 %v802
    %831 = vmatprep.subr.mxu0 0.0
    %832 = vmatpush1.msra.mxu0 %v803
    %833 = vmatprep.subr.mxu0 0.0
    %834 = vmatpush1.msra.mxu0 %v804
    %835 = vmatprep.subr.mxu0 0.0
    %836 = vmatpush1.msra.mxu0 %v805
    %837 = vmatprep.subr.mxu0 0.0
    %838 = vmatpush1.msra.mxu0 %v806
    %839 = vmatprep.subr.mxu0 0.0
    %840 = vmatpush1.msra.mxu0 0.0
    %841 = vmatprep.subr.mxu0 0.0
    %842 = vmatpush1.msra.mxu0 0.0
    %843 = vmatprep.subr.mxu0 0.0
    %844 = vmatpush1.msra.mxu0 0.0
    %845 = vmatprep.subr.mxu0 0.0
    %846 = vmatpush1.msra.mxu0 0.0
    %847 = vmatprep.subr.mxu0 0.0
    %848 = vmatpush1.msra.mxu0 0.0
    %849 = vmatprep.subr.mxu0 0.0
    %850 = vmatpush1.msra.mxu0 0.0
    %851 = vmatprep.subr.mxu0 0.0
    %852 = vmatpush1.msra.mxu0 0.0
    %853 = vmatprep.subr.mxu0 0.0
    %854 = vmatpush1.msra.mxu0 0.0
    %855 = vmatprep.subr.mxu0 0.0
    %856 = vmatpush1.msra.mxu0 0.0
    %857 = vmatprep.subr.mxu0 0.0
    %858 = vmatpush1.msra.mxu0 0.0
    %859 = vmatprep.subr.mxu0 0.0
    %860 = vmatpush1.msra.mxu0 0.0
    %861 = vmatprep.subr.mxu0 0.0
    %862 = vmatpush1.msra.mxu0 0.0
    %863 = vmatprep.subr.mxu0 0.0
    %864 = vmatpush1.msra.mxu0 0.0
    %865 = vmatprep.subr.mxu0 0.0
    %866 = vmatpush1.msra.mxu0 0.0
    %867 = vmatprep.subr.mxu0 0.0
    %868 = vmatpush1.msra.mxu0 0.0
    %869 = vmatprep.subr.mxu0 0.0
    %870 = vmatpush1.msra.mxu0 0.0
    %871 = vmatprep.mubr.f32.mxu0 0.0
    %872 = vmatmul.mubr.f32.gmra.mrb[0].mxu0 %v486
    %v873 = vpop.f32.mrb[0].mxu0
    %v874 = vadd.f32 0.0, %v873
    %v875 = vpop.f32.mrb[0].mxu0
    %876 = vmatprep.mubr.f32.mxu0 0.0
    %877 = vmatmul.mubr.f32.gmra.mrb[0].mxu0 %v487
    %v878 = vpop.f32.mrb[0].mxu0
    %v879 = vadd.f32 0.0, %v878
    %v880 = vpop.f32.mrb[0].mxu0
    %881 = vmatprep.mubr.f32.mxu0 0.0
    %882 = vmatmul.mubr.f32.gmra.mrb[0].mxu0 %v488
    %v883 = vpop.f32.mrb[0].mxu0
    %v884 = vadd.f32 0.0, %v883
    %v885 = vpop.f32.mrb[0].mxu0
    %886 = vmatprep.mubr.f32.mxu0 0.0
    %887 = vmatmul.mubr.f32.gmra.mrb[0].mxu0 %v489
    %v888 = vpop.f32.mrb[0].mxu0
    %v889 = vadd.f32 0.0, %v888
    %v890 = vpop.f32.mrb[0].mxu0
    %891 = vmatprep.mubr.f32.mxu0 0.0
    %892 = vmatmul.mubr.f32.gmra.mrb[0].mxu0 %v490
    %v893 = vpop.f32.mrb[0].mxu0
    %v894 = vadd.f32 0.0, %v893
    %v895 = vpop.f32.mrb[0].mxu0
    %896 = vmatprep.mubr.f32.mxu0 0.0
    %897 = vmatmul.mubr.f32.gmra.mrb[0].mxu0 %v491
    %v898 = vpop.f32.mrb[0].mxu0
    %v899 = vadd.f32 0.0, %v898
    %v900 = vpop.f32.mrb[0].mxu0
    %901 = vmatprep.mubr.f32.mxu0 0.0
    %902 = vmatmul.mubr.f32.gmra.mrb[0].mxu0 %v492
    %v903 = vpop.f32.mrb[0].mxu0
    %v904 = vadd.f32 0.0, %v903
    %v905 = vpop.f32.mrb[0].mxu0
    %906 = vmatprep.mubr.f32.mxu0 0.0
    %907 = vmatmul.mubr.f32.gmra.mrb[0].mxu0 %v493
    %v908 = vpop.f32.mrb[0].mxu0
    %v909 = vadd.f32 0.0, %v908
    %v910 = vpop.f32.mrb[0].mxu0
    %911 = vmatprep.mubr.f32.mxu0 0.0
    %912 = vmatmul.mubr.f32.gmra.mrb[0].mxu0 %v494
    %v913 = vpop.f32.mrb[0].mxu0
    %v914 = vadd.f32 0.0, %v913
    %v915 = vpop.f32.mrb[0].mxu0
    %916 = vmatprep.mubr.f32.mxu0 0.0
    %917 = vmatmul.mubr.f32.gmra.mrb[0].mxu0 %v495
    %v918 = vpop.f32.mrb[0].mxu0
    %v919 = vadd.f32 0.0, %v918
    %v920 = vpop.f32.mrb[0].mxu0
    %921 = vmatprep.mubr.f32.mxu0 0.0
    %922 = vmatmul.mubr.f32.gmra.mrb[0].mxu0 %v496
    %v923 = vpop.f32.mrb[0].mxu0
    %v924 = vadd.f32 0.0, %v923
    %v925 = vpop.f32.mrb[0].mxu0
    %926 = vmatprep.mubr.f32.mxu0 0.0
    %927 = vmatmul.mubr.f32.gmra.mrb[0].mxu0 %v497
    %v928 = vpop.f32.mrb[0].mxu0
    %v929 = vadd.f32 0.0, %v928
    %v930 = vpop.f32.mrb[0].mxu0
    %931 = vmatprep.mubr.f32.mxu0 0.0
    %932 = vmatmul.mubr.f32.gmra.mrb[0].mxu0 %v498
    %v933 = vpop.f32.mrb[0].mxu0
    %v934 = vadd.f32 0.0, %v933
    %v935 = vpop.f32.mrb[0].mxu0
    %936 = vmatprep.mubr.f32.mxu0 0.0
    %937 = vmatmul.mubr.f32.gmra.mrb[0].mxu0 %v499
    %v938 = vpop.f32.mrb[0].mxu0
    %v939 = vadd.f32 0.0, %v938
    %v940 = vpop.f32.mrb[0].mxu0
    %941 = vmatprep.mubr.f32.mxu0 0.0
    %942 = vmatmul.mubr.f32.gmra.mrb[0].mxu0 %v500
    %v943 = vpop.f32.mrb[0].mxu0
    %v944 = vadd.f32 0.0, %v943
    %v945 = vpop.f32.mrb[0].mxu0
    %946 = vmatprep.mubr.f32.mxu0 0.0
    %947 = vmatmul.mubr.f32.gmra.mrb[0].mxu0 %v501
    %v948 = vpop.f32.mrb[0].mxu0
    %v949 = vadd.f32 0.0, %v948
    %v950 = vpop.f32.mrb[0].mxu0
    %951 = vdwg.mxu0
    %v952 = vmul.f32 %v550, %v874
    %v953 = vmul.f32 %v551, %v879
    %v954 = vmul.f32 %v552, %v884
    %v955 = vmul.f32 %v553, %v889
    %v956 = vmul.f32 %v554, %v894
    %v957 = vmul.f32 %v555, %v899
    %v958 = vmul.f32 %v556, %v904
    %v959 = vmul.f32 %v557, %v909
    %v960 = vmul.f32 %v558, %v914
    %v961 = vmul.f32 %v559, %v919
    %v962 = vmul.f32 %v560, %v924
    %v963 = vmul.f32 %v561, %v929
    %v964 = vmul.f32 %v562, %v934
    %v965 = vmul.f32 %v563, %v939
    %v966 = vmul.f32 %v564, %v944
    %v967 = vmul.f32 %v565, %v949
    %v968 = vsub.f32 %v759, %v952
    %v969 = vsub.f32 %v760, %v953
    %v970 = vsub.f32 %v761, %v954
    %v971 = vsub.f32 %v762, %v955
    %v972 = vsub.f32 %v763, %v956
    %v973 = vsub.f32 %v764, %v957
    %v974 = vsub.f32 %v765, %v958
    %v975 = vsub.f32 %v766, %v959
    %v976 = vsub.f32 %v767, %v960
    %v977 = vsub.f32 %v768, %v961
    %v978 = vsub.f32 %v769, %v962
    %v979 = vsub.f32 %v770, %v963
    %v980 = vsub.f32 %v771, %v964
    %v981 = vsub.f32 %v772, %v965
    %v982 = vsub.f32 %v773, %v966
    %v983 = vsub.f32 %v774, %v967
    %984 = vst [vmem:[#allocation2 + $0x10] sm:$0xff] %v968
    %985 = vst [vmem:[#allocation2 + $0x28] sm:$0xff] %v969
    %986 = vst [vmem:[#allocation2 + $0x40] sm:$0xff] %v970
    %987 = vst [vmem:[#allocation2 + $0x58] sm:$0xff] %v971
    %988 = vst [vmem:[#allocation2 + $0x70] sm:$0xff] %v972
    %989 = vst [vmem:[#allocation2 + $0x88] sm:$0xff] %v973
    %990 = vst [vmem:[#allocation2 + $0xa0] sm:$0xff] %v974
    %991 = vst [vmem:[#allocation2 + $0xb8] sm:$0xff] %v975
    %992 = vst [vmem:[#allocation2 + $0xd0] sm:$0xff] %v976
    %993 = vst [vmem:[#allocation2 + $0xe8] sm:$0xff] %v977
    %994 = vst [vmem:[#allocation2 + $0x100] sm:$0xff] %v978
    %995 = vst [vmem:[#allocation2 + $0x118] sm:$0xff] %v979
    %996 = vst [vmem:[#allocation2 + $0x130] sm:$0xff] %v980
    %997 = vst [vmem:[#allocation2 + $0x148] sm:$0xff] %v981
    %998 = vst [vmem:[#allocation2 + $0x160] sm:$0xff] %v982
    %999 = vst [vmem:[#allocation2 + $0x178] sm:$0xff] %v983
    %v1000 = vld [vmem:[#allocation2] sm:$0xff]
    %v1001 = vld [vmem:[#allocation2 + $0x8] sm:$0xff]
    %v1002 = vld [vmem:[#allocation2 + $0x10] sm:$0xff]
    %v1003 = vld [vmem:[#allocation2 + $0x18] sm:$0xff]
    %v1004 = vld [vmem:[#allocation2 + $0x20] sm:$0xff]
    %v1005 = vld [vmem:[#allocation2 + $0x28] sm:$0xff]
    %v1006 = vld [vmem:[#allocation2 + $0x30] sm:$0xff]
    %v1007 = vld [vmem:[#allocation2 + $0x38] sm:$0xff]
    %v1008 = vld [vmem:[#allocation2 + $0x40] sm:$0xff]
    %v1009 = vld [vmem:[#allocation2 + $0x48] sm:$0xff]
    %v1010 = vld [vmem:[#allocation2 + $0x50] sm:$0xff]
    %v1011 = vld [vmem:[#allocation2 + $0x58] sm:$0xff]
    %v1012 = vld [vmem:[#allocation2 + $0x60] sm:$0xff]
    %v1013 = vld [vmem:[#allocation2 + $0x68] sm:$0xff]
    %v1014 = vld [vmem:[#allocation2 + $0x70] sm:$0xff]
    %v1015 = vld [vmem:[#allocation2 + $0x78] sm:$0xff]
    %v1016 = vld [vmem:[#allocation2 + $0x80] sm:$0xff]
    %v1017 = vld [vmem:[#allocation2 + $0x88] sm:$0xff]
    %v1018 = vld [vmem:[#allocation2 + $0x90] sm:$0xff]
    %v1019 = vld [vmem:[#allocation2 + $0x98] sm:$0xff]
    %v1020 = vld [vmem:[#allocation2 + $0xa0] sm:$0xff]
    %v1021 = vld [vmem:[#allocation2 + $0xa8] sm:$0xff]
    %v1022 = vld [vmem:[#allocation2 + $0xb0] sm:$0xff]
    %v1023 = vld [vmem:[#allocation2 + $0xb8] sm:$0xff]
    %v1024 = vld [vmem:[#allocation2 + $0xc0] sm:$0xff]
    %v1025 = vld [vmem:[#allocation2 + $0xc8] sm:$0xff]
    %v1026 = vld [vmem:[#allocation2 + $0xd0] sm:$0xff]
    %v1027 = vld [vmem:[#allocation2 + $0xd8] sm:$0xff]
    %v1028 = vld [vmem:[#allocation2 + $0xe0] sm:$0xff]
    %v1029 = vld [vmem:[#allocation2 + $0xe8] sm:$0xff]
    %v1030 = vld [vmem:[#allocation2 + $0xf0] sm:$0xff]
    %v1031 = vld [vmem:[#allocation2 + $0xf8] sm:$0xff]
    %v1032 = vld [vmem:[#allocation2 + $0x100] sm:$0xff]
    %v1033 = vld [vmem:[#allocation2 + $0x108] sm:$0xff]
    %v1034 = vld [vmem:[#allocation2 + $0x110] sm:$0xff]
    %v1035 = vld [vmem:[#allocation2 + $0x118] sm:$0xff]
    %v1036 = vld [vmem:[#allocation2 + $0x120] sm:$0xff]
    %v1037 = vld [vmem:[#allocation2 + $0x128] sm:$0xff]
    %v1038 = vld [vmem:[#allocation2 + $0x130] sm:$0xff]
    %v1039 = vld [vmem:[#allocation2 + $0x138] sm:$0xff]
    %v1040 = vld [vmem:[#allocation2 + $0x140] sm:$0xff]
    %v1041 = vld [vmem:[#allocation2 + $0x148] sm:$0xff]
    %v1042 = vld [vmem:[#allocation2 + $0x150] sm:$0xff]
    %v1043 = vld [vmem:[#allocation2 + $0x158] sm:$0xff]
    %v1044 = vld [vmem:[#allocation2 + $0x160] sm:$0xff]
    %v1045 = vld [vmem:[#allocation2 + $0x168] sm:$0xff]
    %v1046 = vld [vmem:[#allocation2 + $0x170] sm:$0xff]
    %v1047 = vld [vmem:[#allocation2 + $0x178] sm:$0xff]
    %v1048 = vld [vmem:[#allocation5] sm:$0xff]
    %v1049 = vld [vmem:[#allocation5 + $0x8] sm:$0xff]
    %v1050 = vld [vmem:[#allocation5 + $0x10] sm:$0xff]
    %v1051 = vld [vmem:[#allocation5 + $0x18] sm:$0xff]
    %v1052 = vld [vmem:[#allocation5 + $0x20] sm:$0xff]
    %v1053 = vld [vmem:[#allocation5 + $0x28] sm:$0xff]
    %v1054 = vld [vmem:[#allocation5 + $0x30] sm:$0xff]
    %v1055 = vld [vmem:[#allocation5 + $0x38] sm:$0xff]
    %v1056 = vld [vmem:[#allocation5 + $0x40] sm:$0xff]
    %v1057 = vld [vmem:[#allocation5 + $0x48] sm:$0xff]
    %v1058 = vld [vmem:[#allocation5 + $0x50] sm:$0xff]
    %v1059 = vld [vmem:[#allocation5 + $0x58] sm:$0xff]
    %v1060 = vld [vmem:[#allocation5 + $0x60] sm:$0xff]
    %v1061 = vld [vmem:[#allocation5 + $0x68] sm:$0xff]
    %v1062 = vld [vmem:[#allocation5 + $0x70] sm:$0xff]
    %v1063 = vld [vmem:[#allocation5 + $0x78] sm:$0xff]
    %v1064 = vld [vmem:[#allocation5 + $0x80] sm:$0xff]
    %v1065 = vld [vmem:[#allocation5 + $0x88] sm:$0xff]
    %v1066 = vld [vmem:[#allocation5 + $0x90] sm:$0xff]
    %v1067 = vld [vmem:[#allocation5 + $0x98] sm:$0xff]
    %v1068 = vld [vmem:[#allocation5 + $0xa0] sm:$0xff]
    %v1069 = vld [vmem:[#allocation5 + $0xa8] sm:$0xff]
    %v1070 = vld [vmem:[#allocation5 + $0xb0] sm:$0xff]
    %v1071 = vld [vmem:[#allocation5 + $0xb8] sm:$0xff]
    %v1072 = vld [vmem:[#allocation5 + $0xc0] sm:$0xff]
    %v1073 = vld [vmem:[#allocation5 + $0xc8] sm:$0xff]
    %v1074 = vld [vmem:[#allocation5 + $0xd0] sm:$0xff]
    %v1075 = vld [vmem:[#allocation5 + $0xd8] sm:$0xff]
    %v1076 = vld [vmem:[#allocation5 + $0xe0] sm:$0xff]
    %v1077 = vld [vmem:[#allocation5 + $0xe8] sm:$0xff]
    %v1078 = vld [vmem:[#allocation5 + $0xf0] sm:$0xff]
    %v1079 = vld [vmem:[#allocation5 + $0xf8] sm:$0xff]
    %v1080 = vld [vmem:[#allocation5 + $0x100] sm:$0xff]
    %v1081 = vld [vmem:[#allocation5 + $0x108] sm:$0xff]
    %v1082 = vld [vmem:[#allocation5 + $0x110] sm:$0xff]
    %v1083 = vld [vmem:[#allocation5 + $0x118] sm:$0xff]
    %v1084 = vld [vmem:[#allocation5 + $0x120] sm:$0xff]
    %v1085 = vld [vmem:[#allocation5 + $0x128] sm:$0xff]
    %v1086 = vld [vmem:[#allocation5 + $0x130] sm:$0xff]
    %v1087 = vld [vmem:[#allocation5 + $0x138] sm:$0xff]
    %v1088 = vld [vmem:[#allocation5 + $0x140] sm:$0xff]
    %v1089 = vld [vmem:[#allocation5 + $0x148] sm:$0xff]
    %v1090 = vld [vmem:[#allocation5 + $0x150] sm:$0xff]
    %v1091 = vld [vmem:[#allocation5 + $0x158] sm:$0xff]
    %v1092 = vld [vmem:[#allocation5 + $0x160] sm:$0xff]
    %v1093 = vld [vmem:[#allocation5 + $0x168] sm:$0xff]
    %v1094 = vld [vmem:[#allocation5 + $0x170] sm:$0xff]
    %v1095 = vld [vmem:[#allocation5 + $0x178] sm:$0xff]
    %v1096 = vld [vmem:[#allocation7] sm:$0x1]
    %v1098 = vlaneseq
    %v1099 = vshrl.u32 %v1098, 7
    %v1100 = vsub.s32 0, %v1099
    %v1101 = vrot.slane %v1096, %v1100
    %1103 = vmatprep.subr.mxu0 0.0
    %1104 = vmatpush1.msra.mxu0 %v1048
    %1105 = vmatprep.subr.mxu0 0.0
    %1106 = vmatpush1.msra.mxu0 %v1049
    %1107 = vmatprep.subr.mxu0 0.0
    %1108 = vmatpush1.msra.mxu0 %v1050
    %1109 = vmatprep.subr.mxu0 0.0
    %1110 = vmatpush1.msra.mxu0 %v1051
    %1111 = vmatprep.subr.mxu0 0.0
    %1112 = vmatpush1.msra.mxu0 %v1052
    %1113 = vmatprep.subr.mxu0 0.0
    %1114 = vmatpush1.msra.mxu0 %v1053
    %1115 = vmatprep.subr.mxu0 0.0
    %1116 = vmatpush1.msra.mxu0 %v1054
    %1117 = vmatprep.subr.mxu0 0.0
    %1118 = vmatpush1.msra.mxu0 %v1055
    %1119 = vmatprep.subr.mxu0 0.0
    %1120 = vmatpush1.msra.mxu0 %v1056
    %1121 = vmatprep.subr.mxu0 0.0
    %1122 = vmatpush1.msra.mxu0 %v1057
    %1123 = vmatprep.subr.mxu0 0.0
    %1124 = vmatpush1.msra.mxu0 %v1058
    %1125 = vmatprep.subr.mxu0 0.0
    %1126 = vmatpush1.msra.mxu0 %v1059
    %1127 = vmatprep.subr.mxu0 0.0
    %1128 = vmatpush1.msra.mxu0 %v1060
    %1129 = vmatprep.subr.mxu0 0.0
    %1130 = vmatpush1.msra.mxu0 %v1061
    %1131 = vmatprep.subr.mxu0 0.0
    %1132 = vmatpush1.msra.mxu0 %v1062
    %1133 = vmatprep.subr.mxu0 0.0
    %1134 = vmatpush1.msra.mxu0 %v1063
    %1135 = vmatprep.subr.mxu0 0.0
    %1136 = vmatpush1.msra.mxu0 %v1064
    %1137 = vmatprep.subr.mxu0 0.0
    %1138 = vmatpush1.msra.mxu0 %v1065
    %1139 = vmatprep.subr.mxu0 0.0
    %1140 = vmatpush1.msra.mxu0 %v1066
    %1141 = vmatprep.subr.mxu0 0.0
    %1142 = vmatpush1.msra.mxu0 %v1067
    %1143 = vmatprep.subr.mxu0 0.0
    %1144 = vmatpush1.msra.mxu0 %v1068
    %1145 = vmatprep.subr.mxu0 0.0
    %1146 = vmatpush1.msra.mxu0 %v1069
    %1147 = vmatprep.subr.mxu0 0.0
    %1148 = vmatpush1.msra.mxu0 %v1070
    %1149 = vmatprep.subr.mxu0 0.0
    %1150 = vmatpush1.msra.mxu0 %v1071
    %1151 = vmatprep.subr.mxu0 0.0
    %1152 = vmatpush1.msra.mxu0 %v1072
    %1153 = vmatprep.subr.mxu0 0.0
    %1154 = vmatpush1.msra.mxu0 %v1073
    %1155 = vmatprep.subr.mxu0 0.0
    %1156 = vmatpush1.msra.mxu0 %v1074
    %1157 = vmatprep.subr.mxu0 0.0
    %1158 = vmatpush1.msra.mxu0 %v1075
    %1159 = vmatprep.subr.mxu0 0.0
    %1160 = vmatpush1.msra.mxu0 %v1076
    %1161 = vmatprep.subr.mxu0 0.0
    %1162 = vmatpush1.msra.mxu0 %v1077
    %1163 = vmatprep.subr.mxu0 0.0
    %1164 = vmatpush1.msra.mxu0 %v1078
    %1165 = vmatprep.subr.mxu0 0.0
    %1166 = vmatpush1.msra.mxu0 %v1079
    %1167 = vmatprep.mubr.f32.mxu0 %v1001
    %1168 = vmatmul.mubr.f32.gmra.mrb[0].mxu0 %v1000
    %v1169 = vpop.f32.mrb[0].mxu0
    %v1170 = vadd.f32 %v1101, %v1169
    %v1171 = vpop.f32.mrb[0].mxu0
    %1172 = vmatprep.mubr.f32.mxu0 %v1004
    %1173 = vmatmul.mubr.f32.gmra.mrb[0].mxu0 %v1003
    %v1174 = vpop.f32.mrb[0].mxu0
    %v1175 = vadd.f32 %v1101, %v1174
    %v1176 = vpop.f32.mrb[0].mxu0
    %1177 = vmatprep.mubr.f32.mxu0 %v1007
    %1178 = vmatmul.mubr.f32.gmra.mrb[0].mxu0 %v1006
    %v1179 = vpop.f32.mrb[0].mxu0
    %v1180 = vadd.f32 %v1101, %v1179
    %v1181 = vpop.f32.mrb[0].mxu0
    %1182 = vmatprep.mubr.f32.mxu0 %v1010
    %1183 = vmatmul.mubr.f32.gmra.mrb[0].mxu0 %v1009
    %v1184 = vpop.f32.mrb[0].mxu0
    %v1185 = vadd.f32 %v1101, %v1184
    %v1186 = vpop.f32.mrb[0].mxu0
    %1187 = vmatprep.mubr.f32.mxu0 %v1013
    %1188 = vmatmul.mubr.f32.gmra.mrb[0].mxu0 %v1012
    %v1189 = vpop.f32.mrb[0].mxu0
    %v1190 = vadd.f32 %v1101, %v1189
    %v1191 = vpop.f32.mrb[0].mxu0
    %1192 = vmatprep.mubr.f32.mxu0 %v1016
    %1193 = vmatmul.mubr.f32.gmra.mrb[0].mxu0 %v1015
    %v1194 = vpop.f32.mrb[0].mxu0
    %v1195 = vadd.f32 %v1101, %v1194
    %v1196 = vpop.f32.mrb[0].mxu0
    %1197 = vmatprep.mubr.f32.mxu0 %v1019
    %1198 = vmatmul.mubr.f32.gmra.mrb[0].mxu0 %v1018
    %v1199 = vpop.f32.mrb[0].mxu0
    %v1200 = vadd.f32 %v1101, %v1199
    %v1201 = vpop.f32.mrb[0].mxu0
    %1202 = vmatprep.mubr.f32.mxu0 %v1022
    %1203 = vmatmul.mubr.f32.gmra.mrb[0].mxu0 %v1021
    %v1204 = vpop.f32.mrb[0].mxu0
    %v1205 = vadd.f32 %v1101, %v1204
    %v1206 = vpop.f32.mrb[0].mxu0
    %1207 = vmatprep.mubr.f32.mxu0 %v1025
    %1208 = vmatmul.mubr.f32.gmra.mrb[0].mxu0 %v1024
    %v1209 = vpop.f32.mrb[0].mxu0
    %v1210 = vadd.f32 %v1101, %v1209
    %v1211 = vpop.f32.mrb[0].mxu0
    %1212 = vmatprep.mubr.f32.mxu0 %v1028
    %1213 = vmatmul.mubr.f32.gmra.mrb[0].mxu0 %v1027
    %v1214 = vpop.f32.mrb[0].mxu0
    %v1215 = vadd.f32 %v1101, %v1214
    %v1216 = vpop.f32.mrb[0].mxu0
    %1217 = vmatprep.mubr.f32.mxu0 %v1031
    %1218 = vmatmul.mubr.f32.gmra.mrb[0].mxu0 %v1030
    %v1219 = vpop.f32.mrb[0].mxu0
    %v1220 = vadd.f32 %v1101, %v1219
    %v1221 = vpop.f32.mrb[0].mxu0
    %1222 = vmatprep.mubr.f32.mxu0 %v1034
    %1223 = vmatmul.mubr.f32.gmra.mrb[0].mxu0 %v1033
    %v1224 = vpop.f32.mrb[0].mxu0
    %v1225 = vadd.f32 %v1101, %v1224
    %v1226 = vpop.f32.mrb[0].mxu0
    %1227 = vmatprep.mubr.f32.mxu0 %v1037
    %1228 = vmatmul.mubr.f32.gmra.mrb[0].mxu0 %v1036
    %v1229 = vpop.f32.mrb[0].mxu0
    %v1230 = vadd.f32 %v1101, %v1229
    %v1231 = vpop.f32.mrb[0].mxu0
    %1232 = vmatprep.mubr.f32.mxu0 %v1040
    %1233 = vmatmul.mubr.f32.gmra.mrb[0].mxu0 %v1039
    %v1234 = vpop.f32.mrb[0].mxu0
    %v1235 = vadd.f32 %v1101, %v1234
    %v1236 = vpop.f32.mrb[0].mxu0
    %1237 = vmatprep.mubr.f32.mxu0 %v1043
    %1238 = vmatmul.mubr.f32.gmra.mrb[0].mxu0 %v1042
    %v1239 = vpop.f32.mrb[0].mxu0
    %v1240 = vadd.f32 %v1101, %v1239
    %v1241 = vpop.f32.mrb[0].mxu0
    %1242 = vmatprep.mubr.f32.mxu0 %v1046
    %1243 = vmatmul.mubr.f32.gmra.mrb[0].mxu0 %v1045
    %v1244 = vpop.f32.mrb[0].mxu0
    %v1245 = vadd.f32 %v1101, %v1244
    %v1246 = vpop.f32.mrb[0].mxu0
    %1247 = vdwg.mxu0
    %1248 = vmatprep.subr.mxu0 0.0
    %1249 = vmatpush1.msra.mxu0 %v1080
    %1250 = vmatprep.subr.mxu0 0.0
    %1251 = vmatpush1.msra.mxu0 %v1081
    %1252 = vmatprep.subr.mxu0 0.0
    %1253 = vmatpush1.msra.mxu0 %v1082
    %1254 = vmatprep.subr.mxu0 0.0
    %1255 = vmatpush1.msra.mxu0 %v1083
    %1256 = vmatprep.subr.mxu0 0.0
    %1257 = vmatpush1.msra.mxu0 %v1084
    %1258 = vmatprep.subr.mxu0 0.0
    %1259 = vmatpush1.msra.mxu0 %v1085
    %1260 = vmatprep.subr.mxu0 0.0
    %1261 = vmatpush1.msra.mxu0 %v1086
    %1262 = vmatprep.subr.mxu0 0.0
    %1263 = vmatpush1.msra.mxu0 %v1087
    %1264 = vmatprep.subr.mxu0 0.0
    %1265 = vmatpush1.msra.mxu0 %v1088
    %1266 = vmatprep.subr.mxu0 0.0
    %1267 = vmatpush1.msra.mxu0 %v1089
    %1268 = vmatprep.subr.mxu0 0.0
    %1269 = vmatpush1.msra.mxu0 %v1090
    %1270 = vmatprep.subr.mxu0 0.0
    %1271 = vmatpush1.msra.mxu0 %v1091
    %1272 = vmatprep.subr.mxu0 0.0
    %1273 = vmatpush1.msra.mxu0 %v1092
    %1274 = vmatprep.subr.mxu0 0.0
    %1275 = vmatpush1.msra.mxu0 %v1093
    %1276 = vmatprep.subr.mxu0 0.0
    %1277 = vmatpush1.msra.mxu0 %v1094
    %1278 = vmatprep.subr.mxu0 0.0
    %1279 = vmatpush1.msra.mxu0 %v1095
    %1280 = vmatprep.subr.mxu0 0.0
    %1281 = vmatpush1.msra.mxu0 0.0
    %1282 = vmatprep.subr.mxu0 0.0
    %1283 = vmatpush1.msra.mxu0 0.0
    %1284 = vmatprep.subr.mxu0 0.0
    %1285 = vmatpush1.msra.mxu0 0.0
    %1286 = vmatprep.subr.mxu0 0.0
    %1287 = vmatpush1.msra.mxu0 0.0
    %1288 = vmatprep.subr.mxu0 0.0
    %1289 = vmatpush1.msra.mxu0 0.0
    %1290 = vmatprep.subr.mxu0 0.0
    %1291 = vmatpush1.msra.mxu0 0.0
    %1292 = vmatprep.subr.mxu0 0.0
    %1293 = vmatpush1.msra.mxu0 0.0
    %1294 = vmatprep.subr.mxu0 0.0
    %1295 = vmatpush1.msra.mxu0 0.0
    %1296 = vmatprep.subr.mxu0 0.0
    %1297 = vmatpush1.msra.mxu0 0.0
    %1298 = vmatprep.subr.mxu0 0.0
    %1299 = vmatpush1.msra.mxu0 0.0
    %1300 = vmatprep.subr.mxu0 0.0
    %1301 = vmatpush1.msra.mxu0 0.0
    %1302 = vmatprep.subr.mxu0 0.0
    %1303 = vmatpush1.msra.mxu0 0.0
    %1304 = vmatprep.subr.mxu0 0.0
    %1305 = vmatpush1.msra.mxu0 0.0
    %1306 = vmatprep.subr.mxu0 0.0
    %1307 = vmatpush1.msra.mxu0 0.0
    %1308 = vmatprep.subr.mxu0 0.0
    %1309 = vmatpush1.msra.mxu0 0.0
    %1310 = vmatprep.subr.mxu0 0.0
    %1311 = vmatpush1.msra.mxu0 0.0
    %1312 = vmatprep.mubr.f32.mxu0 0.0
    %1313 = vmatmul.mubr.f32.gmra.mrb[0].mxu0 %v1002
    %v1314 = vpop.f32.mrb[0].mxu0
    %v1315 = vadd.f32 %v1170, %v1314
    %v1316 = vpop.f32.mrb[0].mxu0
    %1317 = vmatprep.mubr.f32.mxu0 0.0
    %1318 = vmatmul.mubr.f32.gmra.mrb[0].mxu0 %v1005
    %v1319 = vpop.f32.mrb[0].mxu0
    %v1320 = vadd.f32 %v1175, %v1319
    %v1321 = vpop.f32.mrb[0].mxu0
    %1322 = vmatprep.mubr.f32.mxu0 0.0
    %1323 = vmatmul.mubr.f32.gmra.mrb[0].mxu0 %v1008
    %v1324 = vpop.f32.mrb[0].mxu0
    %v1325 = vadd.f32 %v1180, %v1324
    %v1326 = vpop.f32.mrb[0].mxu0
    %1327 = vmatprep.mubr.f32.mxu0 0.0
    %1328 = vmatmul.mubr.f32.gmra.mrb[0].mxu0 %v1011
    %v1329 = vpop.f32.mrb[0].mxu0
    %v1330 = vadd.f32 %v1185, %v1329
    %v1331 = vpop.f32.mrb[0].mxu0
    %1332 = vmatprep.mubr.f32.mxu0 0.0
    %1333 = vmatmul.mubr.f32.gmra.mrb[0].mxu0 %v1014
    %v1334 = vpop.f32.mrb[0].mxu0
    %v1335 = vadd.f32 %v1190, %v1334
    %v1336 = vpop.f32.mrb[0].mxu0
    %1337 = vmatprep.mubr.f32.mxu0 0.0
    %1338 = vmatmul.mubr.f32.gmra.mrb[0].mxu0 %v1017
    %v1339 = vpop.f32.mrb[0].mxu0
    %v1340 = vadd.f32 %v1195, %v1339
    %v1341 = vpop.f32.mrb[0].mxu0
    %1342 = vmatprep.mubr.f32.mxu0 0.0
    %1343 = vmatmul.mubr.f32.gmra.mrb[0].mxu0 %v1020
    %v1344 = vpop.f32.mrb[0].mxu0
    %v1345 = vadd.f32 %v1200, %v1344
    %v1346 = vpop.f32.mrb[0].mxu0
    %1347 = vmatprep.mubr.f32.mxu0 0.0
    %1348 = vmatmul.mubr.f32.gmra.mrb[0].mxu0 %v1023
    %v1349 = vpop.f32.mrb[0].mxu0
    %v1350 = vadd.f32 %v1205, %v1349
    %v1351 = vpop.f32.mrb[0].mxu0
    %1352 = vmatprep.mubr.f32.mxu0 0.0
    %1353 = vmatmul.mubr.f32.gmra.mrb[0].mxu0 %v1026
    %v1354 = vpop.f32.mrb[0].mxu0
    %v1355 = vadd.f32 %v1210, %v1354
    %v1356 = vpop.f32.mrb[0].mxu0
    %1357 = vmatprep.mubr.f32.mxu0 0.0
    %1358 = vmatmul.mubr.f32.gmra.mrb[0].mxu0 %v1029
    %v1359 = vpop.f32.mrb[0].mxu0
    %v1360 = vadd.f32 %v1215, %v1359
    %v1361 = vpop.f32.mrb[0].mxu0
    %1362 = vmatprep.mubr.f32.mxu0 0.0
    %1363 = vmatmul.mubr.f32.gmra.mrb[0].mxu0 %v1032
    %v1364 = vpop.f32.mrb[0].mxu0
    %v1365 = vadd.f32 %v1220, %v1364
    %v1366 = vpop.f32.mrb[0].mxu0
    %1367 = vmatprep.mubr.f32.mxu0 0.0
    %1368 = vmatmul.mubr.f32.gmra.mrb[0].mxu0 %v1035
    %v1369 = vpop.f32.mrb[0].mxu0
    %v1370 = vadd.f32 %v1225, %v1369
    %v1371 = vpop.f32.mrb[0].mxu0
    %1372 = vmatprep.mubr.f32.mxu0 0.0
    %1373 = vmatmul.mubr.f32.gmra.mrb[0].mxu0 %v1038
    %v1374 = vpop.f32.mrb[0].mxu0
    %v1375 = vadd.f32 %v1230, %v1374
    %v1376 = vpop.f32.mrb[0].mxu0
    %1377 = vmatprep.mubr.f32.mxu0 0.0
    %1378 = vmatmul.mubr.f32.gmra.mrb[0].mxu0 %v1041
    %v1379 = vpop.f32.mrb[0].mxu0
    %v1380 = vadd.f32 %v1235, %v1379
    %v1381 = vpop.f32.mrb[0].mxu0
    %1382 = vmatprep.mubr.f32.mxu0 0.0
    %1383 = vmatmul.mubr.f32.gmra.mrb[0].mxu0 %v1044
    %v1384 = vpop.f32.mrb[0].mxu0
    %v1385 = vadd.f32 %v1240, %v1384
    %v1386 = vpop.f32.mrb[0].mxu0
    %1387 = vmatprep.mubr.f32.mxu0 0.0
    %1388 = vmatmul.mubr.f32.gmra.mrb[0].mxu0 %v1047
    %v1389 = vpop.f32.mrb[0].mxu0
    %v1390 = vadd.f32 %v1245, %v1389
    %v1391 = vpop.f32.mrb[0].mxu0
    %1392 = vdwg.mxu0
    %v1393 = vmax.f32 %v1315, 0.0
    %v1394 = vmax.f32 %v1320, 0.0
    %v1395 = vmax.f32 %v1325, 0.0
    %v1396 = vmax.f32 %v1330, 0.0
    %v1397 = vmax.f32 %v1335, 0.0
    %v1398 = vmax.f32 %v1340, 0.0
    %v1399 = vmax.f32 %v1345, 0.0
    %v1400 = vmax.f32 %v1350, 0.0
    %v1401 = vmax.f32 %v1355, 0.0
    %v1402 = vmax.f32 %v1360, 0.0
    %v1403 = vmax.f32 %v1365, 0.0
    %v1404 = vmax.f32 %v1370, 0.0
    %v1405 = vmax.f32 %v1375, 0.0
    %v1406 = vmax.f32 %v1380, 0.0
    %v1407 = vmax.f32 %v1385, 0.0
    %v1408 = vmax.f32 %v1390, 0.0
    %v1409 = vld [vmem:[#allocation8] sm:$0xff]
    %v1410 = vld [vmem:[#allocation8 + $0x8] sm:$0xff]
    %v1411 = vld [vmem:[#allocation8 + $0x10] sm:$0xff]
    %v1412 = vld [vmem:[#allocation8 + $0x18] sm:$0xff]
    %v1413 = vld [vmem:[#allocation8 + $0x20] sm:$0xff]
    %v1414 = vld [vmem:[#allocation8 + $0x28] sm:$0xff]
    %v1415 = vld [vmem:[#allocation8 + $0x30] sm:$0xff]
    %v1416 = vld [vmem:[#allocation8 + $0x38] sm:$0xff]
    %v1417 = vld [vmem:[#allocation8 + $0x40] sm:$0xff]
    %v1418 = vld [vmem:[#allocation8 + $0x48] sm:$0xff]
    %v1419 = vld [vmem:[#allocation8 + $0x50] sm:$0xff]
    %v1420 = vld [vmem:[#allocation8 + $0x58] sm:$0xff]
    %v1421 = vld [vmem:[#allocation8 + $0x60] sm:$0xff]
    %v1422 = vld [vmem:[#allocation8 + $0x68] sm:$0xff]
    %v1423 = vld [vmem:[#allocation8 + $0x70] sm:$0xff]
    %v1424 = vld [vmem:[#allocation8 + $0x78] sm:$0xff]
    %v1425 = vld [vmem:[%s9] sm:$0x1]
    %v1427 = vlaneseq
    %v1428 = vshrl.u32 %v1427, 7
    %v1429 = vsub.s32 0, %v1428
    %v1430 = vrot.slane %v1425, %v1429
    %1432 = vmatprep.subr.mxu0 0.0
    %1433 = vmatpush1.msra.mxu0 %v1409
    %1434 = vmatprep.subr.mxu0 0.0
    %1435 = vmatpush1.msra.mxu0 %v1410
    %1436 = vmatprep.subr.mxu0 0.0
    %1437 = vmatpush1.msra.mxu0 %v1411
    %1438 = vmatprep.subr.mxu0 0.0
    %1439 = vmatpush1.msra.mxu0 %v1412
    %1440 = vmatprep.subr.mxu0 0.0
    %1441 = vmatpush1.msra.mxu0 %v1413
    %1442 = vmatprep.subr.mxu0 0.0
    %1443 = vmatpush1.msra.mxu0 %v1414
    %1444 = vmatprep.subr.mxu0 0.0
    %1445 = vmatpush1.msra.mxu0 %v1415
    %1446 = vmatprep.subr.mxu0 0.0
    %1447 = vmatpush1.msra.mxu0 %v1416
    %1448 = vmatprep.subr.mxu0 0.0
    %1449 = vmatpush1.msra.mxu0 %v1417
    %1450 = vmatprep.subr.mxu0 0.0
    %1451 = vmatpush1.msra.mxu0 %v1418
    %1452 = vmatprep.subr.mxu0 0.0
    %1453 = vmatpush1.msra.mxu0 %v1419
    %1454 = vmatprep.subr.mxu0 0.0
    %1455 = vmatpush1.msra.mxu0 %v1420
    %1456 = vmatprep.subr.mxu0 0.0
    %1457 = vmatpush1.msra.mxu0 %v1421
    %1458 = vmatprep.subr.mxu0 0.0
    %1459 = vmatpush1.msra.mxu0 %v1422
    %1460 = vmatprep.subr.mxu0 0.0
    %1461 = vmatpush1.msra.mxu0 %v1423
    %1462 = vmatprep.subr.mxu0 0.0
    %1463 = vmatpush1.msra.mxu0 %v1424
    %1464 = vmatprep.subr.mxu0 0.0
    %1465 = vmatpush1.msra.mxu0 0.0
    %1466 = vmatprep.subr.mxu0 0.0
    %1467 = vmatpush1.msra.mxu0 0.0
    %1468 = vmatprep.subr.mxu0 0.0
    %1469 = vmatpush1.msra.mxu0 0.0
    %1470 = vmatprep.subr.mxu0 0.0
    %1471 = vmatpush1.msra.mxu0 0.0
    %1472 = vmatprep.subr.mxu0 0.0
    %1473 = vmatpush1.msra.mxu0 0.0
    %1474 = vmatprep.subr.mxu0 0.0
    %1475 = vmatpush1.msra.mxu0 0.0
    %1476 = vmatprep.subr.mxu0 0.0
    %1477 = vmatpush1.msra.mxu0 0.0
    %1478 = vmatprep.subr.mxu0 0.0
    %1479 = vmatpush1.msra.mxu0 0.0
    %1480 = vmatprep.subr.mxu0 0.0
    %1481 = vmatpush1.msra.mxu0 0.0
    %1482 = vmatprep.subr.mxu0 0.0
    %1483 = vmatpush1.msra.mxu0 0.0
    %1484 = vmatprep.subr.mxu0 0.0
    %1485 = vmatpush1.msra.mxu0 0.0
    %1486 = vmatprep.subr.mxu0 0.0
    %1487 = vmatpush1.msra.mxu0 0.0
    %1488 = vmatprep.subr.mxu0 0.0
    %1489 = vmatpush1.msra.mxu0 0.0
    %1490 = vmatprep.subr.mxu0 0.0
    %1491 = vmatpush1.msra.mxu0 0.0
    %1492 = vmatprep.subr.mxu0 0.0
    %1493 = vmatpush1.msra.mxu0 0.0
    %1494 = vmatprep.subr.mxu0 0.0
    %1495 = vmatpush1.msra.mxu0 0.0
    %1496 = vmatprep.mubr.f32.mxu0 0.0
    %1497 = vmatmul.mubr.f32.gmra.mrb[0].mxu0 %v1393
    %v1498 = vpop.f32.mrb[0].mxu0
    %v1499 = vadd.f32 %v1430, %v1498
    %v1500 = vpop.f32.mrb[0].mxu0
    %1501 = vmatprep.mubr.f32.mxu0 0.0
    %1502 = vmatmul.mubr.f32.gmra.mrb[0].mxu0 %v1394
    %v1503 = vpop.f32.mrb[0].mxu0
    %v1504 = vadd.f32 %v1430, %v1503
    %v1505 = vpop.f32.mrb[0].mxu0
    %1506 = vmatprep.mubr.f32.mxu0 0.0
    %1507 = vmatmul.mubr.f32.gmra.mrb[0].mxu0 %v1395
    %v1508 = vpop.f32.mrb[0].mxu0
    %v1509 = vadd.f32 %v1430, %v1508
    %v1510 = vpop.f32.mrb[0].mxu0
    %1511 = vmatprep.mubr.f32.mxu0 0.0
    %1512 = vmatmul.mubr.f32.gmra.mrb[0].mxu0 %v1396
    %v1513 = vpop.f32.mrb[0].mxu0
    %v1514 = vadd.f32 %v1430, %v1513
    %v1515 = vpop.f32.mrb[0].mxu0
    %1516 = vmatprep.mubr.f32.mxu0 0.0
    %1517 = vmatmul.mubr.f32.gmra.mrb[0].mxu0 %v1397
    %v1518 = vpop.f32.mrb[0].mxu0
    %v1519 = vadd.f32 %v1430, %v1518
    %v1520 = vpop.f32.mrb[0].mxu0
    %1521 = vmatprep.mubr.f32.mxu0 0.0
    %1522 = vmatmul.mubr.f32.gmra.mrb[0].mxu0 %v1398
    %v1523 = vpop.f32.mrb[0].mxu0
    %v1524 = vadd.f32 %v1430, %v1523
    %v1525 = vpop.f32.mrb[0].mxu0
    %1526 = vmatprep.mubr.f32.mxu0 0.0
    %1527 = vmatmul.mubr.f32.gmra.mrb[0].mxu0 %v1399
    %v1528 = vpop.f32.mrb[0].mxu0
    %v1529 = vadd.f32 %v1430, %v1528
    %v1530 = vpop.f32.mrb[0].mxu0
    %1531 = vmatprep.mubr.f32.mxu0 0.0
    %1532 = vmatmul.mubr.f32.gmra.mrb[0].mxu0 %v1400
    %v1533 = vpop.f32.mrb[0].mxu0
    %v1534 = vadd.f32 %v1430, %v1533
    %v1535 = vpop.f32.mrb[0].mxu0
    %1536 = vmatprep.mubr.f32.mxu0 0.0
    %1537 = vmatmul.mubr.f32.gmra.mrb[0].mxu0 %v1401
    %v1538 = vpop.f32.mrb[0].mxu0
    %v1539 = vadd.f32 %v1430, %v1538
    %v1540 = vpop.f32.mrb[0].mxu0
    %1541 = vmatprep.mubr.f32.mxu0 0.0
    %1542 = vmatmul.mubr.f32.gmra.mrb[0].mxu0 %v1402
    %v1543 = vpop.f32.mrb[0].mxu0
    %v1544 = vadd.f32 %v1430, %v1543
    %v1545 = vpop.f32.mrb[0].mxu0
    %1546 = vmatprep.mubr.f32.mxu0 0.0
    %1547 = vmatmul.mubr.f32.gmra.mrb[0].mxu0 %v1403
    %v1548 = vpop.f32.mrb[0].mxu0
    %v1549 = vadd.f32 %v1430, %v1548
    %v1550 = vpop.f32.mrb[0].mxu0
    %1551 = vmatprep.mubr.f32.mxu0 0.0
    %1552 = vmatmul.mubr.f32.gmra.mrb[0].mxu0 %v1404
    %v1553 = vpop.f32.mrb[0].mxu0
    %v1554 = vadd.f32 %v1430, %v1553
    %v1555 = vpop.f32.mrb[0].mxu0
    %1556 = vmatprep.mubr.f32.mxu0 0.0
    %1557 = vmatmul.mubr.f32.gmra.mrb[0].mxu0 %v1405
    %v1558 = vpop.f32.mrb[0].mxu0
    %v1559 = vadd.f32 %v1430, %v1558
    %v1560 = vpop.f32.mrb[0].mxu0
    %1561 = vmatprep.mubr.f32.mxu0 0.0
    %1562 = vmatmul.mubr.f32.gmra.mrb[0].mxu0 %v1406
    %v1563 = vpop.f32.mrb[0].mxu0
    %v1564 = vadd.f32 %v1430, %v1563
    %v1565 = vpop.f32.mrb[0].mxu0
    %1566 = vmatprep.mubr.f32.mxu0 0.0
    %1567 = vmatmul.mubr.f32.gmra.mrb[0].mxu0 %v1407
    %v1568 = vpop.f32.mrb[0].mxu0
    %v1569 = vadd.f32 %v1430, %v1568
    %v1570 = vpop.f32.mrb[0].mxu0
    %1571 = vmatprep.mubr.f32.mxu0 0.0
    %1572 = vmatmul.mubr.f32.gmra.mrb[0].mxu0 %v1408
    %v1573 = vpop.f32.mrb[0].mxu0
    %v1574 = vadd.f32 %v1430, %v1573
    %v1575 = vpop.f32.mrb[0].mxu0
    %1576 = vdwg.mxu0
    %1577 = vst [vmem:[%s10] sm:$0xff] %v1499
    %1578 = vst [vmem:[%s10 + $0x8] sm:$0xff] %v1504
    %1579 = vst [vmem:[%s10 + $0x10] sm:$0xff] %v1509
    %1580 = vst [vmem:[%s10 + $0x18] sm:$0xff] %v1514
    %1581 = vst [vmem:[%s10 + $0x20] sm:$0xff] %v1519
    %1582 = vst [vmem:[%s10 + $0x28] sm:$0xff] %v1524
    %1583 = vst [vmem:[%s10 + $0x30] sm:$0xff] %v1529
    %1584 = vst [vmem:[%s10 + $0x38] sm:$0xff] %v1534
    %1585 = vst [vmem:[%s10 + $0x40] sm:$0xff] %v1539
    %1586 = vst [vmem:[%s10 + $0x48] sm:$0xff] %v1544
    %1587 = vst [vmem:[%s10 + $0x50] sm:$0xff] %v1549
    %1588 = vst [vmem:[%s10 + $0x58] sm:$0xff] %v1554
    %1589 = vst [vmem:[%s10 + $0x60] sm:$0xff] %v1559
    %1590 = vst [vmem:[%s10 + $0x68] sm:$0xff] %v1564
    %1591 = vst [vmem:[%s10 + $0x70] sm:$0xff] %v1569
    %1592 = vst [vmem:[%s10 + $0x78] sm:$0xff] %v1574
    // Predicated region
    $region58: #{forward.1} parent=1 // pred_check
      _
    $region59: #{forward.1} parent=1 // pred_check_branch
      %1594 = sbr.rel (0) target = $region61
    $region60: #{forward.1} parent=1 // pred_region
      _
    $region61: #{forward.1} parent=1 // pred_fallthru
      _
    // Predicated region
    $region62: #{forward.1} parent=1 // pred_check
      _
    $region63: #{forward.1} parent=1 // pred_check_branch
      %1596 = sbr.rel (0) target = $region65
    $region64: #{forward.1} parent=1 // pred_region
      _
    $region65: #{forward.1} parent=1 // pred_fallthru
      _
    %1597 = vsyncpa [#allocation4], 1
    %1598 = vsyncpa [#allocation6], 1
    %1599 = vsyncpa [#allocation9], 1

</llo_original>
